<compile_context>
chip_gen: v7x
topology: tpu7x:2x2x1
jax: 0.10.0
libtpu: 0.0.40
codegen_flags: <defaults>
</compile_context>

<pallas_src>
import math
import functools

import jax
import jax.numpy as jnp
import numpy as np
from jax.experimental import pallas as pl
from jax.experimental.pallas import tpu as pltpu


def encoder_kernel(hs_ref, mask_ref,
                   wq_ref, bq_ref, wk_ref, bk_ref, wv_ref, bv_ref,
                   wo_ref, bo_ref,
                   g1_ref, be1_ref,
                   w1_ref, bf1_ref, w2_ref, bf2_ref,
                   g2_ref, be2_ref,
                   out_ref, ctx_ref, *, num_heads, head_group, eps):
    f32, bf16 = jnp.float32, jnp.bfloat16

    # One grid step == one batch element.
    x = hs_ref[0].astype(f32)                    # (S, H) residual path in f32
    S, H = x.shape
    dh = H // num_heads
    mask = mask_ref[0].astype(f32)               # (1, S) additive mask, f32

    x_bf = x.astype(bf16)
    scale = 1.0 / math.sqrt(dh)

    def proj(w_ref, b_ref):
        # bf16 operands, f32 MXU accumulation; bias add in f32.
        return jnp.dot(x_bf, w_ref[...], preferred_element_type=f32) + b_ref[...]

    # Fold 1/sqrt(dh) into Q once; cast Q/K/V to bf16 before the head split.
    q_bf = (proj(wq_ref, bq_ref) * scale).astype(bf16)
    k_bf = proj(wk_ref, bk_ref).astype(bf16)
    v_bf = proj(wv_ref, bv_ref).astype(bf16)

    def split(t, heads):
        # TODO(synk): replace slice+stack with a single lane-splitting reshape
        # once it lowers cleanly in Mosaic for these shapes.
        return jnp.stack([t[:, h * dh:(h + 1) * dh] for h in heads], axis=0)

    # Head-group loop bounds live (g,S,S) f32 score/prob memory.  Per-head
    # context is written into a lane-dense (S, H) bf16 slab so the output
    # projection is one K=H matmul against the original Wo (no (NH,S,H) f32
    # temporary, no MXU depth underfill from K=dh).
    for g0 in range(0, num_heads, head_group):
        heads = tuple(range(g0, min(g0 + head_group, num_heads)))
        qh, kh, vh = split(q_bf, heads), split(k_bf, heads), split(v_bf, heads)

        s = jnp.einsum("hqd,hkd->hqk", qh, kh, preferred_element_type=f32)
        s = s + mask                              # additive mask in f32
        s = s - jnp.max(s, axis=-1, keepdims=True)
        # TODO(synk): compute exp in bf16 on v6e/v7x (bf16 EUP path); kept f32
        # for v5e compatibility and numeric parity.
        p = jnp.exp(s)
        inv = pl.reciprocal(jnp.sum(p, axis=-1, keepdims=True), approx=False)
        p = p * inv
        ctx_g = jnp.einsum("hqk,hkd->hqd", p.astype(bf16), vh,
                           preferred_element_type=f32)   # (g, S, dh)
        for i, h in enumerate(heads):
            ctx_ref[:, h * dh:(h + 1) * dh] = ctx_g[i].astype(bf16)

    # Single fused output projection over the lane-dense context slab.
    attn = jnp.dot(ctx_ref[...], wo_ref[...], preferred_element_type=f32) + bo_ref[...]

    def layernorm(z, g_ref, b_ref):
        mu = jnp.mean(z, axis=-1, keepdims=True)
        var = jnp.mean((z - mu) ** 2, axis=-1, keepdims=True)
        return (z - mu) * jax.lax.rsqrt(var + eps) * g_ref[...] + b_ref[...]

    # Dropout layers are identity in eval mode.
    y = layernorm(attn + x, g1_ref, be1_ref)     # attNorm(attention + residual)

    # FeedForward: H -> 4H (GELU) -> H, bf16 matmuls with f32 accumulation.
    h1 = jnp.dot(y.astype(bf16), w1_ref[...], preferred_element_type=f32) + bf1_ref[...]
    h1 = jax.nn.gelu(h1, approximate=True)       # TODO(synk): exact erf-GELU if FeedForward uses nn.GELU default
    ff = jnp.dot(h1.astype(bf16), w2_ref[...], preferred_element_type=f32) + bf2_ref[...]

    out_ref[0] = layernorm(ff + y, g2_ref, be2_ref).astype(out_ref.dtype)


@functools.lru_cache(maxsize=None)
def _single_buffer_supported():
    """Feature-detect pl.Buffered(1) with a tiny probe kernel so the real
    encoder call is never wrapped in a blanket try/except."""
    if not hasattr(pl, "Buffered"):
        return False

    def probe(w_ref, o_ref):
        o_ref[...] = w_ref[...] * 2.0

    try:
        f = pl.pallas_call(
            probe,
            out_shape=jax.ShapeDtypeStruct((8, 128), jnp.float32),
            grid=(2,),
            in_specs=[pl.BlockSpec((8, 128), lambda i: (0, 0),
                                   pipeline_mode=pl.Buffered(1))],
            out_specs=pl.BlockSpec((8, 128), lambda i: (0, 0)),
        )
        jax.block_until_ready(f(jnp.ones((8, 128), jnp.float32)))
        return True
    except Exception:
        return False


def _pick_head_group(num_heads, S, budget_bytes=2 * 1024 * 1024):
    # Largest divisor of num_heads whose live f32 scores+probs fit the budget.
    best = 1
    for g in range(1, num_heads + 1):
        if num_heads % g == 0 and 2 * g * S * S * 4 <= budget_bytes:
            best = g
    return best


def _vmem_limit_bytes(S, H, FF, num_heads, head_group, single_buffer_weights):
    wbytes = 2 * (4 * H * H + 2 * H * FF)              # bf16 matmul weights
    pbytes = 4 * (8 * H + FF)                          # f32 biases / LN params
    w_mult = 1 if single_buffer_weights else 2         # no double-count if Buffered(1)
    abytes = 4 * (10 * S * H + 2 * S * FF + 3 * head_group * S * S)
    est = w_mult * wbytes + 2 * pbytes + 2 * abytes + (4 << 20)
    try:
        phys = pltpu.get_tpu_info().vmem_capacity_bytes
    except Exception:
        phys = 64 * 1024 * 1024                        # conservative fallback
    cap = int(phys * 0.8)                              # headroom for Mosaic scratch
    return int(min(max(est, 32 * 1024 * 1024), cap))


def _build_encoder_call(B, S, H, FF, num_heads, head_group, eps, out_dtype,
                        single_buffer_weights):
    def wspec(shape):
        # Weights / biases: block index never changes across the grid, so a
        # single buffer suffices (halves their VMEM footprint) when supported.
        if single_buffer_weights:
            return pl.BlockSpec(shape, lambda b: (0,) * len(shape),
                                pipeline_mode=pl.Buffered(1))
        return pl.BlockSpec(shape, lambda b: (0,) * len(shape))

    in_specs = [
        pl.BlockSpec((1, S, H), lambda b: (b, 0, 0)),   # hidden states
        pl.BlockSpec((1, 1, S), lambda b: (b, 0, 0)),   # additive mask
        wspec((H, H)), wspec((1, H)),                   # Wq, bq
        wspec((H, H)), wspec((1, H)),                   # Wk, bk
        wspec((H, H)), wspec((1, H)),                   # Wv, bv
        wspec((H, H)), wspec((1, H)),                   # Wo, bo
        wspec((1, H)), wspec((1, H)),                   # attNorm gamma, beta
        wspec((H, FF)), wspec((1, FF)),                 # FFN W1, b1
        wspec((FF, H)), wspec((1, H)),                  # FFN W2, b2
        wspec((1, H)), wspec((1, H)),                   # outputNorm gamma, beta
    ]

    kernel = functools.partial(encoder_kernel, num_heads=num_heads,
                               head_group=head_group, eps=eps)
    return pl.pallas_call(
        kernel,
        out_shape=jax.ShapeDtypeStruct((B, S, H), out_dtype),
        grid_spec=pltpu.PrefetchScalarGridSpec(
            num_scalar_prefetch=0,
            grid=(B,),
            in_specs=in_specs,
            out_specs=pl.BlockSpec((1, S, H), lambda b: (b, 0, 0)),
            scratch_shapes=[pltpu.VMEM((S, H), jnp.bfloat16)],   # ctx slab
        ),
        compiler_params=pltpu.CompilerParams(
            dimension_semantics=("parallel",),
            vmem_limit_bytes=_vmem_limit_bytes(S, H, FF, num_heads, head_group,
                                               single_buffer_weights),
        ),
    )
    # TODO(synk): for v7x / long sequences add a query-tile grid axis with
    # online softmax plus an FFN K-reduction axis so peak VMEM fits 64 MiB and
    # both TensorCores get a parallel axis even when B == 1.


def encoder_forward(hidden_states, attention_mask, params, *, num_heads, eps=1e-12):
    B, S, H = hidden_states.shape
    FF = params["w1"].shape[1]
    head_group = _pick_head_group(num_heads, S)
    single_buffer = _single_buffer_supported()

    call = _build_encoder_call(B, S, H, FF, num_heads, head_group, eps,
                               hidden_states.dtype, single_buffer)
    return call(hidden_states, attention_mask,
                params["wq"], params["bq"], params["wk"], params["bk"],
                params["wv"], params["bv"], params["wo"], params["bo"],
                params["g1"], params["be1"],
                params["w1"], params["bf1"], params["w2"], params["bf2"],
                params["g2"], params["be2"])


def reference_forward(x, mask, p, num_heads, eps=1e-12):
    """Pure-JAX reference mirroring the kernel's bf16-matmul / f32-accum numerics."""
    f32, bf16 = jnp.float32, jnp.bfloat16
    B, S, H = x.shape
    dh = H // num_heads
    scale = 1.0 / math.sqrt(dh)

    def ln(z, g, b):
        mu = jnp.mean(z, -1, keepdims=True)
        var = jnp.mean((z - mu) ** 2, -1, keepdims=True)
        return (z - mu) * jax.lax.rsqrt(var + eps) * g + b

    def mm(a, w):
        return jnp.einsum("...k,kj->...j", a.astype(bf16), w.astype(bf16),
                          preferred_element_type=f32)

    q = (mm(x, p["wq"]) + p["bq"]) * scale
    k = mm(x, p["wk"]) + p["bk"]
    v = mm(x, p["wv"]) + p["bv"]

    def heads(t):
        return t.reshape(B, S, num_heads, dh).transpose(0, 2, 1, 3).astype(bf16)

    qh, kh, vh = heads(q), heads(k), heads(v)
    s = jnp.einsum("bhqd,bhkd->bhqk", qh, kh, preferred_element_type=f32)
    s = s + mask[:, :, None, :]
    a = jax.nn.softmax(s, axis=-1)
    ctx = jnp.einsum("bhqk,bhkd->bhqd", a.astype(bf16), vh, preferred_element_type=f32)
    ctx = ctx.transpose(0, 2, 1, 3).reshape(B, S, H)
    attn = mm(ctx, p["wo"]) + p["bo"]
    y = ln(attn + x, p["g1"], p["be1"])
    h1 = jax.nn.gelu(mm(y, p["w1"]) + p["bf1"], approximate=True)
    ff = mm(h1, p["w2"]) + p["bf2"]
    return ln(ff + y, p["g2"], p["be2"])


def make_params(key, H, FF):
    ks = jax.random.split(key, 8)
    w = lambda k, s: (jax.random.normal(k, s, jnp.float32) * 0.02).astype(jnp.bfloat16)
    z = lambda s: jnp.zeros(s, jnp.float32)
    return {
        "wq": w(ks[0], (H, H)), "bq": z((1, H)),
        "wk": w(ks[1], (H, H)), "bk": z((1, H)),
        "wv": w(ks[2], (H, H)), "bv": z((1, H)),
        "wo": w(ks[3], (H, H)), "bo": z((1, H)),
        "g1": jnp.ones((1, H), jnp.float32), "be1": z((1, H)),
        "w1": w(ks[4], (H, FF)), "bf1": z((1, FF)),
        "w2": w(ks[5], (FF, H)), "bf2": z((1, H)),
        "g2": jnp.ones((1, H), jnp.float32), "be2": z((1, H)),
    }


if __name__ == "__main__":
    B, S, H, NH = 2, 8, 32, 4
    FF = 4 * H

    key = jax.random.PRNGKey(0)
    k_x, k_p = jax.random.split(key)

    hidden_states = jax.random.normal(k_x, (B, S, H), jnp.float32)
    # padding mask: batch 0 fully valid; batch 1 has last 2 tokens padded
    valid = jnp.array([[1.0] * S, [1.0] * (S - 2) + [0.0] * 2], jnp.float32)
    attention_mask = ((1.0 - valid) * -10000.0).reshape(B, 1, S)

    params = make_params(k_p, H, FF)

    out = encoder_forward(hidden_states, attention_mask, params, num_heads=NH)
    out = jax.block_until_ready(out)

    ref = reference_forward(hidden_states, attention_mask, params, NH)
    np.testing.assert_allclose(np.asarray(out, dtype=np.float32),
                               np.asarray(ref, dtype=np.float32),
                               rtol=1e-2, atol=1e-2)

    print("KERNEL_OK")
</pallas_src>

<mosaic_0001>
module attributes {stable_mosaic.version = 11 : i64} {
  func.func @probe(%arg0: i32, %arg1: memref<8x128xf32, #tpu.memory_space<vmem>>, %arg2: memref<8x128xf32, #tpu.memory_space<vmem>>) attributes {dimension_semantics = [#tpu.dimension_semantics<arbitrary>], iteration_bounds = array<i64: 2>, scalar_prefetch = 0 : i64, scratch_operands = 0 : i64, tpu.core_type = #tpu.core_type<tc>, window_params = [{pipeline_mode = #tpu.pipeline_mode<synchronous>, transform_indices = @transform_0, window_bounds = array<i64: 8, 128>}, {pipeline_mode = #tpu.pipeline_mode<synchronous>, transform_indices = @transform_1, window_bounds = array<i64: 8, 128>}]} {
    %c0 = arith.constant 0 : index
    %c0_0 = arith.constant 0 : index
    %0 = vector.load %arg1[%c0, %c0_0] : memref<8x128xf32, #tpu.memory_space<vmem>>, vector<8x128xf32>
    %cst = arith.constant 2.000000e+00 : f32
    %1 = vector.broadcast %cst : f32 to vector<8x128xf32>
    %2 = arith.mulf %0, %1 : vector<8x128xf32>
    %c0_1 = arith.constant 0 : index
    %c0_2 = arith.constant 0 : index
    %3 = vector.load %arg2[%c0_1, %c0_2] : memref<8x128xf32, #tpu.memory_space<vmem>>, vector<8x128xf32>
    tpu.vector_store %arg2[%c0_1, %c0_2], %2 {strides = array<i32>} : memref<8x128xf32, #tpu.memory_space<vmem>>, vector<8x128xf32>,
    return
  }
  func.func @transform_0(%arg0: i32) -> (i32, i32) {
    %c0_i32 = arith.constant 0 : i32
    %c0_i32_0 = arith.constant 0 : i32
    %c0_i32_1 = arith.constant 0 : i32
    return %c0_i32, %c0_i32_0 : i32, i32
  }
  func.func @transform_1(%arg0: i32) -> (i32, i32) {
    %c0_i32 = arith.constant 0 : i32
    %c0_i32_0 = arith.constant 0 : i32
    %c0_i32_1 = arith.constant 0 : i32
    return %c0_i32, %c0_i32_0 : i32, i32
  }
}

module attributes {stable_mosaic.version = 11 : i64} {
  func.func @encoder_kernel(%arg0: i32, %arg1: memref<1x8x32xf32, #tpu.memory_space<vmem>>, %arg2: memref<1x1x8xf32, #tpu.memory_space<vmem>>, %arg3: memref<32x32xbf16, #tpu.memory_space<vmem>>, %arg4: memref<1x32xf32, #tpu.memory_space<vmem>>, %arg5: memref<32x32xbf16, #tpu.memory_space<vmem>>, %arg6: memref<1x32xf32, #tpu.memory_space<vmem>>, %arg7: memref<32x32xbf16, #tpu.memory_space<vmem>>, %arg8: memref<1x32xf32, #tpu.memory_space<vmem>>, %arg9: memref<32x32xbf16, #tpu.memory_space<vmem>>, %arg10: memref<1x32xf32, #tpu.memory_space<vmem>>, %arg11: memref<1x32xf32, #tpu.memory_space<vmem>>, %arg12: memref<1x32xf32, #tpu.memory_space<vmem>>, %arg13: memref<32x128xbf16, #tpu.memory_space<vmem>>, %arg14: memref<1x128xf32, #tpu.memory_space<vmem>>, %arg15: memref<128x32xbf16, #tpu.memory_space<vmem>>, %arg16: memref<1x32xf32, #tpu.memory_space<vmem>>, %arg17: memref<1x32xf32, #tpu.memory_space<vmem>>, %arg18: memref<1x32xf32, #tpu.memory_space<vmem>>, %arg19: memref<1x8x32xf32, #tpu.memory_space<vmem>>, %arg20: memref<8x32xbf16, #tpu.memory_space<vmem>>) attributes {dimension_semantics = [#tpu.dimension_semantics<parallel>], iteration_bounds = array<i64: 2>, scalar_prefetch = 0 : i64, scratch_operands = 1 : i64, tpu.core_type = #tpu.core_type<tc>, window_params = [{transform_indices = @transform_0, window_bounds = array<i64: 1, 8, 32>}, {transform_indices = @transform_1, window_bounds = array<i64: 1, 1, 8>}, {pipeline_mode = #tpu.pipeline_mode<synchronous>, transform_indices = @transform_2, window_bounds = array<i64: 32, 32>}, {pipeline_mode = #tpu.pipeline_mode<synchronous>, transform_indices = @transform_3, window_bounds = array<i64: 1, 32>}, {pipeline_mode = #tpu.pipeline_mode<synchronous>, transform_indices = @transform_4, window_bounds = array<i64: 32, 32>}, {pipeline_mode = #tpu.pipeline_mode<synchronous>, transform_indices = @transform_5, window_bounds = array<i64: 1, 32>}, {pipeline_mode = #tpu.pipeline_mode<synchronous>, transform_indices = @transform_6, window_bounds = array<i64: 32, 32>}, {pipeline_mode = #tpu.pipeline_mode<synchronous>, transform_indices = @transform_7, window_bounds = array<i64: 1, 32>}, {pipeline_mode = #tpu.pipeline_mode<synchronous>, transform_indices = @transform_8, window_bounds = array<i64: 32, 32>}, {pipeline_mode = #tpu.pipeline_mode<synchronous>, transform_indices = @transform_9, window_bounds = array<i64: 1, 32>}, {pipeline_mode = #tpu.pipeline_mode<synchronous>, transform_indices = @transform_10, window_bounds = array<i64: 1, 32>}, {pipeline_mode = #tpu.pipeline_mode<synchronous>, transform_indices = @transform_11, window_bounds = array<i64: 1, 32>}, {pipeline_mode = #tpu.pipeline_mode<synchronous>, transform_indices = @transform_12, window_bounds = array<i64: 32, 128>}, {pipeline_mode = #tpu.pipeline_mode<synchronous>, transform_indices = @transform_13, window_bounds = array<i64: 1, 128>}, {pipeline_mode = #tpu.pipeline_mode<synchronous>, transform_indices = @transform_14, window_bounds = array<i64: 128, 32>}, {pipeline_mode = #tpu.pipeline_mode<synchronous>, transform_indices = @transform_15, window_bounds = array<i64: 1, 32>}, {pipeline_mode = #tpu.pipeline_mode<synchronous>, transform_indices = @transform_16, window_bounds = array<i64: 1, 32>}, {pipeline_mode = #tpu.pipeline_mode<synchronous>, transform_indices = @transform_17, window_bounds = array<i64: 1, 32>}, {transform_indices = @transform_18, window_bounds = array<i64: 1, 8, 32>}]} {
    %c0 = arith.constant 0 : index
    %c0_0 = arith.constant 0 : index
    %c0_1 = arith.constant 0 : index
    %0 = vector.load %arg1[%c0, %c0_0, %c0_1] : memref<1x8x32xf32, #tpu.memory_space<vmem>>, vector<1x8x32xf32>
    %1 = vector.shape_cast %0 : vector<1x8x32xf32> to vector<8x32xf32>
    %c0_2 = arith.constant 0 : index
    %c0_3 = arith.constant 0 : index
    %c0_4 = arith.constant 0 : index
    %2 = vector.load %arg2[%c0_2, %c0_3, %c0_4] : memref<1x1x8xf32, #tpu.memory_space<vmem>>, vector<1x1x8xf32>
    %3 = vector.shape_cast %2 : vector<1x1x8xf32> to vector<1x8xf32>
    %4 = arith.truncf %1 : vector<8x32xf32> to vector<8x32xbf16>
    %c0_5 = arith.constant 0 : index
    %c0_6 = arith.constant 0 : index
    %5 = vector.load %arg3[%c0_5, %c0_6] : memref<32x32xbf16, #tpu.memory_space<vmem>>, vector<32x32xbf16>
    %cst = arith.constant dense<0.000000e+00> : vector<8x32xf32>
    %6 = tpu.matmul %4, %5, %cst {dimension_numbers = #tpu.dot_dimension_numbers<[1], [0], [0], [1], [0, 0, 1, 1], [], []>} : vector<8x32xbf16>, vector<32x32xbf16>, vector<8x32xf32> -> vector<8x32xf32>
    %c0_7 = arith.constant 0 : index
    %c0_8 = arith.constant 0 : index
    %7 = vector.load %arg4[%c0_7, %c0_8] : memref<1x32xf32, #tpu.memory_space<vmem>>, vector<1x32xf32>
    %8 = vector.broadcast %7 : vector<1x32xf32> to vector<8x32xf32>
    %9 = arith.addf %6, %8 : vector<8x32xf32>
    %cst_9 = arith.constant 0.353553385 : f32
    %10 = vector.broadcast %cst_9 : f32 to vector<8x32xf32>
    %11 = arith.mulf %9, %10 : vector<8x32xf32>
    %12 = arith.truncf %11 : vector<8x32xf32> to vector<8x32xbf16>
    %c0_10 = arith.constant 0 : index
    %c0_11 = arith.constant 0 : index
    %13 = vector.load %arg5[%c0_10, %c0_11] : memref<32x32xbf16, #tpu.memory_space<vmem>>, vector<32x32xbf16>
    %cst_12 = arith.constant dense<0.000000e+00> : vector<8x32xf32>
    %14 = tpu.matmul %4, %13, %cst_12 {dimension_numbers = #tpu.dot_dimension_numbers<[1], [0], [0], [1], [0, 0, 1, 1], [], []>} : vector<8x32xbf16>, vector<32x32xbf16>, vector<8x32xf32> -> vector<8x32xf32>
    %c0_13 = arith.constant 0 : index
    %c0_14 = arith.constant 0 : index
    %15 = vector.load %arg6[%c0_13, %c0_14] : memref<1x32xf32, #tpu.memory_space<vmem>>, vector<1x32xf32>
    %16 = vector.broadcast %15 : vector<1x32xf32> to vector<8x32xf32>
    %17 = arith.addf %14, %16 : vector<8x32xf32>
    %18 = arith.truncf %17 : vector<8x32xf32> to vector<8x32xbf16>
    %c0_15 = arith.constant 0 : index
    %c0_16 = arith.constant 0 : index
    %19 = vector.load %arg7[%c0_15, %c0_16] : memref<32x32xbf16, #tpu.memory_space<vmem>>, vector<32x32xbf16>
    %cst_17 = arith.constant dense<0.000000e+00> : vector<8x32xf32>
    %20 = tpu.matmul %4, %19, %cst_17 {dimension_numbers = #tpu.dot_dimension_numbers<[1], [0], [0], [1], [0, 0, 1, 1], [], []>} : vector<8x32xbf16>, vector<32x32xbf16>, vector<8x32xf32> -> vector<8x32xf32>
    %c0_18 = arith.constant 0 : index
    %c0_19 = arith.constant 0 : index
    %21 = vector.load %arg8[%c0_18, %c0_19] : memref<1x32xf32, #tpu.memory_space<vmem>>, vector<1x32xf32>
    %22 = vector.broadcast %21 : vector<1x32xf32> to vector<8x32xf32>
    %23 = arith.addf %20, %22 : vector<8x32xf32>
    %24 = arith.truncf %23 : vector<8x32xf32> to vector<8x32xbf16>
    %25 = vector.extract_strided_slice %12 {offsets = [0, 0], sizes = [8, 8], strides = [1, 1]} : vector<8x32xbf16> to vector<8x8xbf16>
    %26 = vector.extract_strided_slice %12 {offsets = [0, 8], sizes = [8, 8], strides = [1, 1]} : vector<8x32xbf16> to vector<8x8xbf16>
    %27 = vector.extract_strided_slice %12 {offsets = [0, 16], sizes = [8, 8], strides = [1, 1]} : vector<8x32xbf16> to vector<8x8xbf16>
    %28 = vector.extract_strided_slice %12 {offsets = [0, 24], sizes = [8, 8], strides = [1, 1]} : vector<8x32xbf16> to vector<8x8xbf16>
    %29 = vector.shape_cast %25 : vector<8x8xbf16> to vector<1x8x8xbf16>
    %30 = vector.shape_cast %26 : vector<8x8xbf16> to vector<1x8x8xbf16>
    %31 = vector.shape_cast %27 : vector<8x8xbf16> to vector<1x8x8xbf16>
    %32 = vector.shape_cast %28 : vector<8x8xbf16> to vector<1x8x8xbf16>
    %33 = tpu.concatenate %29, %30, %31, %32 in 0 : vector<1x8x8xbf16>, vector<1x8x8xbf16>, vector<1x8x8xbf16>, vector<1x8x8xbf16> -> vector<4x8x8xbf16>
    %34 = vector.extract_strided_slice %18 {offsets = [0, 0], sizes = [8, 8], strides = [1, 1]} : vector<8x32xbf16> to vector<8x8xbf16>
    %35 = vector.extract_strided_slice %18 {offsets = [0, 8], sizes = [8, 8], strides = [1, 1]} : vector<8x32xbf16> to vector<8x8xbf16>
    %36 = vector.extract_strided_slice %18 {offsets = [0, 16], sizes = [8, 8], strides = [1, 1]} : vector<8x32xbf16> to vector<8x8xbf16>
    %37 = vector.extract_strided_slice %18 {offsets = [0, 24], sizes = [8, 8], strides = [1, 1]} : vector<8x32xbf16> to vector<8x8xbf16>
    %38 = vector.shape_cast %34 : vector<8x8xbf16> to vector<1x8x8xbf16>
    %39 = vector.shape_cast %35 : vector<8x8xbf16> to vector<1x8x8xbf16>
    %40 = vector.shape_cast %36 : vector<8x8xbf16> to vector<1x8x8xbf16>
    %41 = vector.shape_cast %37 : vector<8x8xbf16> to vector<1x8x8xbf16>
    %42 = tpu.concatenate %38, %39, %40, %41 in 0 : vector<1x8x8xbf16>, vector<1x8x8xbf16>, vector<1x8x8xbf16>, vector<1x8x8xbf16> -> vector<4x8x8xbf16>
    %43 = vector.extract_strided_slice %24 {offsets = [0, 0], sizes = [8, 8], strides = [1, 1]} : vector<8x32xbf16> to vector<8x8xbf16>
    %44 = vector.extract_strided_slice %24 {offsets = [0, 8], sizes = [8, 8], strides = [1, 1]} : vector<8x32xbf16> to vector<8x8xbf16>
    %45 = vector.extract_strided_slice %24 {offsets = [0, 16], sizes = [8, 8], strides = [1, 1]} : vector<8x32xbf16> to vector<8x8xbf16>
    %46 = vector.extract_strided_slice %24 {offsets = [0, 24], sizes = [8, 8], strides = [1, 1]} : vector<8x32xbf16> to vector<8x8xbf16>
    %47 = vector.shape_cast %43 : vector<8x8xbf16> to vector<1x8x8xbf16>
    %48 = vector.shape_cast %44 : vector<8x8xbf16> to vector<1x8x8xbf16>
    %49 = vector.shape_cast %45 : vector<8x8xbf16> to vector<1x8x8xbf16>
    %50 = vector.shape_cast %46 : vector<8x8xbf16> to vector<1x8x8xbf16>
    %51 = tpu.concatenate %47, %48, %49, %50 in 0 : vector<1x8x8xbf16>, vector<1x8x8xbf16>, vector<1x8x8xbf16>, vector<1x8x8xbf16> -> vector<4x8x8xbf16>
    "tpu.trace_start"() <{level = 10 : i32, message = "hqd,hkd->hqk"}> : () -> ()
    %cst_20 = arith.constant dense<0.000000e+00> : vector<4x8x8xf32>
    %52 = tpu.matmul %33, %42, %cst_20 {dimension_numbers = #tpu.dot_dimension_numbers<[2], [2], [1], [1], [0, 0, 0, 1, 1, 1], [0], [0]>} : vector<4x8x8xbf16>, vector<4x8x8xbf16>, vector<4x8x8xf32> -> vector<4x8x8xf32>
    "tpu.trace_stop"() : () -> ()
    %53 = vector.shape_cast %3 : vector<1x8xf32> to vector<1x1x8xf32>
    %54 = vector.broadcast %53 : vector<1x1x8xf32> to vector<4x8x8xf32>
    %55 = arith.addf %52, %54 : vector<4x8x8xf32>
    %cst_21 = arith.constant dense<0xFF800000> : vector<4x8xf32>
    %56 = vector.multi_reduction <maximumf>, %55, %cst_21 [2] : vector<4x8x8xf32> to vector<4x8xf32>
    %57 = vector.shape_cast %56 : vector<4x8xf32> to vector<4x8x1xf32>
    %58 = vector.broadcast %57 : vector<4x8x1xf32> to vector<4x8x8xf32>
    %59 = arith.subf %55, %58 : vector<4x8x8xf32>
    %60 = math.exp %59 : vector<4x8x8xf32>
    %cst_22 = arith.constant dense<0.000000e+00> : vector<4x8xf32>
    %61 = vector.multi_reduction <add>, %60, %cst_22 [2] : vector<4x8x8xf32> to vector<4x8xf32>
    %62 = vector.shape_cast %61 : vector<4x8xf32> to vector<4x8x1xf32>
    %63 = tpu.reciprocal %62 : vector<4x8x1xf32> -> vector<4x8x1xf32>
    %64 = vector.broadcast %63 : vector<4x8x1xf32> to vector<4x8x8xf32>
    %65 = arith.mulf %60, %64 : vector<4x8x8xf32>
    %66 = arith.truncf %65 : vector<4x8x8xf32> to vector<4x8x8xbf16>
    "tpu.trace_start"() <{level = 10 : i32, message = "hqk,hkd->hqd"}> : () -> ()
    %cst_23 = arith.constant dense<0.000000e+00> : vector<4x8x8xf32>
    %67 = tpu.matmul %66, %51, %cst_23 {dimension_numbers = #tpu.dot_dimension_numbers<[2], [1], [1], [2], [0, 0, 0, 1, 1, 2], [0], [0]>} : vector<4x8x8xbf16>, vector<4x8x8xbf16>, vector<4x8x8xf32> -> vector<4x8x8xf32>
    "tpu.trace_stop"() : () -> ()
    %68 = vector.extract_strided_slice %67 {offsets = [0, 0, 0], sizes = [1, 8, 8], strides = [1, 1, 1]} : vector<4x8x8xf32> to vector<1x8x8xf32>
    %69 = vector.shape_cast %68 : vector<1x8x8xf32> to vector<8x8xf32>
    %70 = arith.truncf %69 : vector<8x8xf32> to vector<8x8xbf16>
    %c0_24 = arith.constant 0 : index
    %c0_25 = arith.constant 0 : index
    %71 = vector.load %arg20[%c0_24, %c0_25] : memref<8x32xbf16, #tpu.memory_space<vmem>>, vector<8x8xbf16>
    tpu.vector_store %arg20[%c0_24, %c0_25], %70 {strides = array<i32>} : memref<8x32xbf16, #tpu.memory_space<vmem>>, vector<8x8xbf16>,
    %72 = vector.extract_strided_slice %67 {offsets = [1, 0, 0], sizes = [1, 8, 8], strides = [1, 1, 1]} : vector<4x8x8xf32> to vector<1x8x8xf32>
    %73 = vector.shape_cast %72 : vector<1x8x8xf32> to vector<8x8xf32>
    %74 = arith.truncf %73 : vector<8x8xf32> to vector<8x8xbf16>
    %c0_26 = arith.constant 0 : index
    %c8 = arith.constant 8 : index
    %75 = vector.load %arg20[%c0_26, %c8] : memref<8x32xbf16, #tpu.memory_space<vmem>>, vector<8x8xbf16>
    tpu.vector_store %arg20[%c0_26, %c8], %74 {strides = array<i32>} : memref<8x32xbf16, #tpu.memory_space<vmem>>, vector<8x8xbf16>,
    %76 = vector.extract_strided_slice %67 {offsets = [2, 0, 0], sizes = [1, 8, 8], strides = [1, 1, 1]} : vector<4x8x8xf32> to vector<1x8x8xf32>
    %77 = vector.shape_cast %76 : vector<1x8x8xf32> to vector<8x8xf32>
    %78 = arith.truncf %77 : vector<8x8xf32> to vector<8x8xbf16>
    %c0_27 = arith.constant 0 : index
    %c16 = arith.constant 16 : index
    %79 = vector.load %arg20[%c0_27, %c16] : memref<8x32xbf16, #tpu.memory_space<vmem>>, vector<8x8xbf16>
    tpu.vector_store %arg20[%c0_27, %c16], %78 {strides = array<i32>} : memref<8x32xbf16, #tpu.memory_space<vmem>>, vector<8x8xbf16>,
    %80 = vector.extract_strided_slice %67 {offsets = [3, 0, 0], sizes = [1, 8, 8], strides = [1, 1, 1]} : vector<4x8x8xf32> to vector<1x8x8xf32>
    %81 = vector.shape_cast %80 : vector<1x8x8xf32> to vector<8x8xf32>
    %82 = arith.truncf %81 : vector<8x8xf32> to vector<8x8xbf16>
    %c0_28 = arith.constant 0 : index
    %c24 = arith.constant 24 : index
    %83 = vector.load %arg20[%c0_28, %c24] : memref<8x32xbf16, #tpu.memory_space<vmem>>, vector<8x8xbf16>
    tpu.vector_store %arg20[%c0_28, %c24], %82 {strides = array<i32>} : memref<8x32xbf16, #tpu.memory_space<vmem>>, vector<8x8xbf16>,
    %c0_29 = arith.constant 0 : index
    %c0_30 = arith.constant 0 : index
    %84 = vector.load %arg20[%c0_29, %c0_30] : memref<8x32xbf16, #tpu.memory_space<vmem>>, vector<8x32xbf16>
    %c0_31 = arith.constant 0 : index
    %c0_32 = arith.constant 0 : index
    %85 = vector.load %arg9[%c0_31, %c0_32] : memref<32x32xbf16, #tpu.memory_space<vmem>>, vector<32x32xbf16>
    %cst_33 = arith.constant dense<0.000000e+00> : vector<8x32xf32>
    %86 = tpu.matmul %84, %85, %cst_33 {dimension_numbers = #tpu.dot_dimension_numbers<[1], [0], [0], [1], [0, 0, 1, 1], [], []>} : vector<8x32xbf16>, vector<32x32xbf16>, vector<8x32xf32> -> vector<8x32xf32>
    %c0_34 = arith.constant 0 : index
    %c0_35 = arith.constant 0 : index
    %87 = vector.load %arg10[%c0_34, %c0_35] : memref<1x32xf32, #tpu.memory_space<vmem>>, vector<1x32xf32>
    %88 = vector.broadcast %87 : vector<1x32xf32> to vector<8x32xf32>
    %89 = arith.addf %86, %88 : vector<8x32xf32>
    %90 = arith.addf %89, %1 : vector<8x32xf32>
    %cst_36 = arith.constant dense<0.000000e+00> : vector<8xf32>
    %91 = vector.multi_reduction <add>, %90, %cst_36 [1] : vector<8x32xf32> to vector<8xf32>
    %92 = vector.shape_cast %91 : vector<8xf32> to vector<8x1xf32>
    %cst_37 = arith.constant 3.200000e+01 : f32
    %93 = vector.broadcast %cst_37 : f32 to vector<8x1xf32>
    %94 = arith.divf %92, %93 : vector<8x1xf32>
    %95 = vector.broadcast %94 : vector<8x1xf32> to vector<8x32xf32>
    %96 = arith.subf %90, %95 : vector<8x32xf32>
    %97 = arith.mulf %96, %96 : vector<8x32xf32>
    %cst_38 = arith.constant dense<0.000000e+00> : vector<8xf32>
    %98 = vector.multi_reduction <add>, %97, %cst_38 [1] : vector<8x32xf32> to vector<8xf32>
    %99 = vector.shape_cast %98 : vector<8xf32> to vector<8x1xf32>
    %cst_39 = arith.constant 3.200000e+01 : f32
    %100 = vector.broadcast %cst_39 : f32 to vector<8x1xf32>
    %101 = arith.divf %99, %100 : vector<8x1xf32>
    %102 = vector.broadcast %94 : vector<8x1xf32> to vector<8x32xf32>
    %103 = arith.subf %90, %102 : vector<8x32xf32>
    %cst_40 = arith.constant 9.99999996E-13 : f32
    %104 = vector.broadcast %cst_40 : f32 to vector<8x1xf32>
    %105 = arith.addf %101, %104 : vector<8x1xf32>
    %106 = math.rsqrt %105 : vector<8x1xf32>
    %107 = vector.broadcast %106 : vector<8x1xf32> to vector<8x32xf32>
    %108 = arith.mulf %103, %107 : vector<8x32xf32>
    %c0_41 = arith.constant 0 : index
    %c0_42 = arith.constant 0 : index
    %109 = vector.load %arg11[%c0_41, %c0_42] : memref<1x32xf32, #tpu.memory_space<vmem>>, vector<1x32xf32>
    %110 = vector.broadcast %109 : vector<1x32xf32> to vector<8x32xf32>
    %111 = arith.mulf %108, %110 : vector<8x32xf32>
    %c0_43 = arith.constant 0 : index
    %c0_44 = arith.constant 0 : index
    %112 = vector.load %arg12[%c0_43, %c0_44] : memref<1x32xf32, #tpu.memory_space<vmem>>, vector<1x32xf32>
    %113 = vector.broadcast %112 : vector<1x32xf32> to vector<8x32xf32>
    %114 = arith.addf %111, %113 : vector<8x32xf32>
    %115 = arith.truncf %114 : vector<8x32xf32> to vector<8x32xbf16>
    %c0_45 = arith.constant 0 : index
    %c0_46 = arith.constant 0 : index
    %116 = vector.load %arg13[%c0_45, %c0_46] : memref<32x128xbf16, #tpu.memory_space<vmem>>, vector<32x128xbf16>
    %cst_47 = arith.constant dense<0.000000e+00> : vector<8x128xf32>
    %117 = tpu.matmul %115, %116, %cst_47 {dimension_numbers = #tpu.dot_dimension_numbers<[1], [0], [0], [1], [0, 0, 1, 1], [], []>} : vector<8x32xbf16>, vector<32x128xbf16>, vector<8x128xf32> -> vector<8x128xf32>
    %c0_48 = arith.constant 0 : index
    %c0_49 = arith.constant 0 : index
    %118 = vector.load %arg14[%c0_48, %c0_49] : memref<1x128xf32, #tpu.memory_space<vmem>>, vector<1x128xf32>
    %119 = vector.broadcast %118 : vector<1x128xf32> to vector<8x128xf32>
    %120 = arith.addf %117, %119 : vector<8x128xf32>
    %121 = arith.mulf %120, %120 : vector<8x128xf32>
    %122 = arith.mulf %120, %121 : vector<8x128xf32>
    %cst_50 = arith.constant 4.471500e-02 : f32
    %123 = vector.broadcast %cst_50 : f32 to vector<8x128xf32>
    %124 = arith.mulf %123, %122 : vector<8x128xf32>
    %125 = arith.addf %120, %124 : vector<8x128xf32>
    %cst_51 = arith.constant 0.797884583 : f32
    %126 = vector.broadcast %cst_51 : f32 to vector<8x128xf32>
    %127 = arith.mulf %126, %125 : vector<8x128xf32>
    %128 = math.tanh %127 : vector<8x128xf32>
    %cst_52 = arith.constant 1.000000e+00 : f32
    %129 = vector.broadcast %cst_52 : f32 to vector<8x128xf32>
    %130 = arith.addf %129, %128 : vector<8x128xf32>
    %cst_53 = arith.constant 5.000000e-01 : f32
    %131 = vector.broadcast %cst_53 : f32 to vector<8x128xf32>
    %132 = arith.mulf %131, %130 : vector<8x128xf32>
    %133 = arith.mulf %120, %132 : vector<8x128xf32>
    %134 = arith.truncf %133 : vector<8x128xf32> to vector<8x128xbf16>
    %c0_54 = arith.constant 0 : index
    %c0_55 = arith.constant 0 : index
    %135 = vector.load %arg15[%c0_54, %c0_55] : memref<128x32xbf16, #tpu.memory_space<vmem>>, vector<128x32xbf16>
    %cst_56 = arith.constant dense<0.000000e+00> : vector<8x32xf32>
    %136 = tpu.matmul %134, %135, %cst_56 {dimension_numbers = #tpu.dot_dimension_numbers<[1], [0], [0], [1], [0, 0, 1, 1], [], []>} : vector<8x128xbf16>, vector<128x32xbf16>, vector<8x32xf32> -> vector<8x32xf32>
    %c0_57 = arith.constant 0 : index
    %c0_58 = arith.constant 0 : index
    %137 = vector.load %arg16[%c0_57, %c0_58] : memref<1x32xf32, #tpu.memory_space<vmem>>, vector<1x32xf32>
    %138 = vector.broadcast %137 : vector<1x32xf32> to vector<8x32xf32>
    %139 = arith.addf %136, %138 : vector<8x32xf32>
    %140 = arith.addf %139, %114 : vector<8x32xf32>
    %cst_59 = arith.constant dense<0.000000e+00> : vector<8xf32>
    %141 = vector.multi_reduction <add>, %140, %cst_59 [1] : vector<8x32xf32> to vector<8xf32>
    %142 = vector.shape_cast %141 : vector<8xf32> to vector<8x1xf32>
    %cst_60 = arith.constant 3.200000e+01 : f32
    %143 = vector.broadcast %cst_60 : f32 to vector<8x1xf32>
    %144 = arith.divf %142, %143 : vector<8x1xf32>
    %145 = vector.broadcast %144 : vector<8x1xf32> to vector<8x32xf32>
    %146 = arith.subf %140, %145 : vector<8x32xf32>
    %147 = arith.mulf %146, %146 : vector<8x32xf32>
    %cst_61 = arith.constant dense<0.000000e+00> : vector<8xf32>
    %148 = vector.multi_reduction <add>, %147, %cst_61 [1] : vector<8x32xf32> to vector<8xf32>
    %149 = vector.shape_cast %148 : vector<8xf32> to vector<8x1xf32>
    %cst_62 = arith.constant 3.200000e+01 : f32
    %150 = vector.broadcast %cst_62 : f32 to vector<8x1xf32>
    %151 = arith.divf %149, %150 : vector<8x1xf32>
    %152 = vector.broadcast %144 : vector<8x1xf32> to vector<8x32xf32>
    %153 = arith.subf %140, %152 : vector<8x32xf32>
    %cst_63 = arith.constant 9.99999996E-13 : f32
    %154 = vector.broadcast %cst_63 : f32 to vector<8x1xf32>
    %155 = arith.addf %151, %154 : vector<8x1xf32>
    %156 = math.rsqrt %155 : vector<8x1xf32>
    %157 = vector.broadcast %156 : vector<8x1xf32> to vector<8x32xf32>
    %158 = arith.mulf %153, %157 : vector<8x32xf32>
    %c0_64 = arith.constant 0 : index
    %c0_65 = arith.constant 0 : index
    %159 = vector.load %arg17[%c0_64, %c0_65] : memref<1x32xf32, #tpu.memory_space<vmem>>, vector<1x32xf32>
    %160 = vector.broadcast %159 : vector<1x32xf32> to vector<8x32xf32>
    %161 = arith.mulf %158, %160 : vector<8x32xf32>
    %c0_66 = arith.constant 0 : index
    %c0_67 = arith.constant 0 : index
    %162 = vector.load %arg18[%c0_66, %c0_67] : memref<1x32xf32, #tpu.memory_space<vmem>>, vector<1x32xf32>
    %163 = vector.broadcast %162 : vector<1x32xf32> to vector<8x32xf32>
    %164 = arith.addf %161, %163 : vector<8x32xf32>
    %c0_68 = arith.constant 0 : index
    %c0_69 = arith.constant 0 : index
    %c0_70 = arith.constant 0 : index
    %165 = vector.load %arg19[%c0_68, %c0_69, %c0_70] : memref<1x8x32xf32, #tpu.memory_space<vmem>>, vector<1x8x32xf32>
    %166 = vector.shape_cast %165 : vector<1x8x32xf32> to vector<8x32xf32>
    %167 = vector.shape_cast %164 : vector<8x32xf32> to vector<1x8x32xf32>
    tpu.vector_store %arg19[%c0_68, %c0_69, %c0_70], %167 {strides = array<i32>} : memref<1x8x32xf32, #tpu.memory_space<vmem>>, vector<1x8x32xf32>,
    return
  }
  func.func @transform_0(%arg0: i32) -> (i32, i32, i32) {
    %c0_i32 = arith.constant 0 : i32
    %c0_i32_0 = arith.constant 0 : i32
    %c0_i32_1 = arith.constant 0 : i32
    return %arg0, %c0_i32, %c0_i32_0 : i32, i32, i32
  }
  func.func @transform_1(%arg0: i32) -> (i32, i32, i32) {
    %c0_i32 = arith.constant 0 : i32
    %c0_i32_0 = arith.constant 0 : i32
    %c0_i32_1 = arith.constant 0 : i32
    return %arg0, %c0_i32, %c0_i32_0 : i32, i32, i32
  }
  func.func @transform_2(%arg0: i32) -> (i32, i32) {
    %c0_i32 = arith.constant 0 : i32
    %c0_i32_0 = arith.constant 0 : i32
    %c0_i32_1 = arith.constant 0 : i32
    return %c0_i32, %c0_i32_0 : i32, i32
  }
  func.func @transform_3(%arg0: i32) -> (i32, i32) {
    %c0_i32 = arith.constant 0 : i32
    %c0_i32_0 = arith.constant 0 : i32
    %c0_i32_1 = arith.constant 0 : i32
    return %c0_i32, %c0_i32_0 : i32, i32
  }
  func.func @transform_4(%arg0: i32) -> (i32, i32) {
    %c0_i32 = arith.constant 0 : i32
    %c0_i32_0 = arith.constant 0 : i32
    %c0_i32_1 = arith.constant 0 : i32
    return %c0_i32, %c0_i32_0 : i32, i32
  }
  func.func @transform_5(%arg0: i32) -> (i32, i32) {
    %c0_i32 = arith.constant 0 : i32
    %c0_i32_0 = arith.constant 0 : i32
    %c0_i32_1 = arith.constant 0 : i32
    return %c0_i32, %c0_i32_0 : i32, i32
  }
  func.func @transform_6(%arg0: i32) -> (i32, i32) {
    %c0_i32 = arith.constant 0 : i32
    %c0_i32_0 = arith.constant 0 : i32
    %c0_i32_1 = arith.constant 0 : i32
    return %c0_i32, %c0_i32_0 : i32, i32
  }
  func.func @transform_7(%arg0: i32) -> (i32, i32) {
    %c0_i32 = arith.constant 0 : i32
    %c0_i32_0 = arith.constant 0 : i32
    %c0_i32_1 = arith.constant 0 : i32
    return %c0_i32, %c0_i32_0 : i32, i32
  }
  func.func @transform_8(%arg0: i32) -> (i32, i32) {
    %c0_i32 = arith.constant 0 : i32
    %c0_i32_0 = arith.constant 0 : i32
    %c0_i32_1 = arith.constant 0 : i32
    return %c0_i32, %c0_i32_0 : i32, i32
  }
  func.func @transform_9(%arg0: i32) -> (i32, i32) {
    %c0_i32 = arith.constant 0 : i32
    %c0_i32_0 = arith.constant 0 : i32
    %c0_i32_1 = arith.constant 0 : i32
    return %c0_i32, %c0_i32_0 : i32, i32
  }
  func.func @transform_10(%arg0: i32) -> (i32, i32) {
    %c0_i32 = arith.constant 0 : i32
    %c0_i32_0 = arith.constant 0 : i32
    %c0_i32_1 = arith.constant 0 : i32
    return %c0_i32, %c0_i32_0 : i32, i32
  }
  func.func @transform_11(%arg0: i32) -> (i32, i32) {
    %c0_i32 = arith.constant 0 : i32
    %c0_i32_0 = arith.constant 0 : i32
    %c0_i32_1 = arith.constant 0 : i32
    return %c0_i32, %c0_i32_0 : i32, i32
  }
  func.func @transform_12(%arg0: i32) -> (i32, i32) {
    %c0_i32 = arith.constant 0 : i32
    %c0_i32_0 = arith.constant 0 : i32
    %c0_i32_1 = arith.constant 0 : i32
    return %c0_i32, %c0_i32_0 : i32, i32
  }
  func.func @transform_13(%arg0: i32) -> (i32, i32) {
    %c0_i32 = arith.constant 0 : i32
    %c0_i32_0 = arith.constant 0 : i32
    %c0_i32_1 = arith.constant 0 : i32
    return %c0_i32, %c0_i32_0 : i32, i32
  }
  func.func @transform_14(%arg0: i32) -> (i32, i32) {
    %c0_i32 = arith.constant 0 : i32
    %c0_i32_0 = arith.constant 0 : i32
    %c0_i32_1 = arith.constant 0 : i32
    return %c0_i32, %c0_i32_0 : i32, i32
  }
  func.func @transform_15(%arg0: i32) -> (i32, i32) {
    %c0_i32 = arith.constant 0 : i32
    %c0_i32_0 = arith.constant 0 : i32
    %c0_i32_1 = arith.constant 0 : i32
    return %c0_i32, %c0_i32_0 : i32, i32
  }
  func.func @transform_16(%arg0: i32) -> (i32, i32) {
    %c0_i32 = arith.constant 0 : i32
    %c0_i32_0 = arith.constant 0 : i32
    %c0_i32_1 = arith.constant 0 : i32
    return %c0_i32, %c0_i32_0 : i32, i32
  }
  func.func @transform_17(%arg0: i32) -> (i32, i32) {
    %c0_i32 = arith.constant 0 : i32
    %c0_i32_0 = arith.constant 0 : i32
    %c0_i32_1 = arith.constant 0 : i32
    return %c0_i32, %c0_i32_0 : i32, i32
  }
  func.func @transform_18(%arg0: i32) -> (i32, i32, i32) {
    %c0_i32 = arith.constant 0 : i32
    %c0_i32_0 = arith.constant 0 : i32
    %c0_i32_1 = arith.constant 0 : i32
    return %arg0, %c0_i32, %c0_i32_0 : i32, i32, i32
  }
}

</mosaic_0001>

<llo_original>
// kernel: tpu_custom_call.1
$region0: #{tpu_custom_call.1}
  #allocation0 [shape = 'u32[]', space=smem, size = 0x4, offset = 0x4, fixed_abs, tag = 'smem constant byte address 0x4 - core index']
  #allocation1 [shape = 'u32[144,128]{1,0:T(1,128)}', space=vmem, size = 0x12000, scoped, tag = 'internal scratch']
  %s0 = inlined_call_operand.hbm [shape: f32[8,128], index: 0, kind: input, shape index: {}]
  %s1 = inlined_call_operand.hbm [shape: f32[8,128], index: 1, kind: output, shape index: {}]
  %s2 = sld [smem:[#allocation0]]
  $region41: #{tpu_custom_call.1} parent=0
    _
  %s4 = ssub.s32 1, %s2
  %s5 = scalar_select 0, %s4, %s2
  $region1: #{tpu_custom_call.1} parent=0
    #allocation2 [shape = 'u8[4096]{0}', space=vmem, size = 0x1000, scoped, tag = 'input window, operand 0, single buffered']
    #allocation3 [shape = 's32[2]{0}', space=sflag, size = 0x8, scoped, tag = 'scoped memory for tpu_custom_call.1']
    #allocation4 [shape = 's32[2]{0}', space=sflag, size = 0x8, scoped, tag = 'scoped memory for tpu_custom_call.1']
    #allocation5 [shape = 'u8[4096]{0}', space=vmem, size = 0x1000, scoped, tag = 'output window, operand 0, single buffered']
    %6 = vsyncpa [#allocation3], 0
    %7 = vsyncpa [#allocation4], 0
    loop: start=0, step=1, limit=4
    $region2: #{tpu_custom_call.1} parent=1 // loop_pre_header
      _
    $region3: #{tpu_custom_call.1} parent=1 // loop_header
      %s9 = sphi 0, %s13
      %p10 = scmp.ge.s32.totalorder %s9, 4
      %s17 = sphi 0, %s17
      %s19 = sphi 0, %s17
      %s20 = sphi 0, %s19
      %s34 = sphi 0, %s20
      %s38 = sphi 0, %s38
      %s40 = sphi 0, %s38
      %s41 = sphi 0, %s40
      %s55 = sphi 0, %s41
    $region4: #{tpu_custom_call.1} parent=1 // loop_header_branch
      %12 = sbr.rel (%p10) target = $region8
    $region5: #{tpu_custom_call.1} parent=1 // loop_body
      %s14 = ssub.s32 %s9, 1
      %s15 = ssub.s32 %s9, 2
      %s16 = sadd.s32 %s9, 1
      %s18 = sadd.s32 %s17, 1
      %p21 = scmp.eq.s32.totalorder %s9, 1
      %p22 = scmp.ne.s32.totalorder %s17, %s19
      %p23 = scmp.eq.s32.totalorder %s9, 0
      %p24 = por %p22, %p23
      %p25 = scmp.ne.s32.totalorder %s17, %s19
      %p26 = scmp.eq.s32.totalorder %s14, 1
      %p27 = por %p25, %p26
      %p28 = scmp.ne.s32.totalorder %s19, %s20
      %p29 = scmp.eq.s32.totalorder %s14, 0
      %p30 = por %p28, %p29
      %p31 = scmp.ne.s32.totalorder %s19, %s20
      %p32 = scmp.eq.s32.totalorder %s15, 1
      %p33 = por %p31, %p32
      %p35 = scmp.ne.s32.totalorder %s20, %s34
      %p36 = scmp.eq.s32.totalorder %s15, 0
      %p37 = por %p35, %p36
      %s39 = sadd.s32 %s38, 1
      %p42 = scmp.eq.s32.totalorder %s9, 1
      %p43 = scmp.ne.s32.totalorder %s38, %s40
      %p44 = scmp.eq.s32.totalorder %s9, 0
      %p45 = por %p43, %p44
      %p46 = scmp.ne.s32.totalorder %s38, %s40
      %p47 = scmp.eq.s32.totalorder %s14, 1
      %p48 = por %p46, %p47
      %p49 = scmp.ne.s32.totalorder %s40, %s41
      %p50 = scmp.eq.s32.totalorder %s14, 0
      %p51 = por %p49, %p50
      %p52 = scmp.ne.s32.totalorder %s40, %s41
      %p53 = scmp.eq.s32.totalorder %s15, 1
      %p54 = por %p52, %p53
      %p56 = scmp.ne.s32.totalorder %s41, %s55
      %p57 = scmp.eq.s32.totalorder %s15, 0
      %p58 = por %p56, %p57
      %p59 = scmp.le.s32.totalorder 1, %s9
      %p60 = scmp.lt.s32.totalorder %s9, 3
      %p61 = pnand %p59, %p60
      %p62 = pneg %p61
      // Predicated region
      $region9: #{tpu_custom_call.1} parent=5 // pred_check
        _
      $region10: #{tpu_custom_call.1} parent=5 // pred_check_branch
        %64 = sbr.rel (%p61) target = $region12
      $region11: #{tpu_custom_call.1} parent=5 // pred_region
        %s65 = ssub.s32 %s9, 1
        // Predicated region
        $region13: #{tpu_custom_call.1} parent=11 // pred_check
          %p66 = pneg %p30
        $region14: #{tpu_custom_call.1} parent=11 // pred_check_branch
          %68 = sbr.rel (%p66) target = $region16
        $region15: #{tpu_custom_call.1} parent=11 // pred_region
          %s70 = ssub.s32 128, 128
          %71 = vsyncadd [#allocation3], %s70
          %s73 = sshll.u32 [#allocation2], 4
          %s74 = int_to_ptr.vmem [resolvable:$true] %s73
          %76 = dma.hbm_to_vmem [thread:$0]  %s0, 128, %s74, [#allocation3]
        $region16: #{tpu_custom_call.1} parent=11 // pred_fallthru
          _
      $region12: #{tpu_custom_call.1} parent=5 // pred_fallthru
        _
      %p77 = scmp.lt.s32.totalorder %s9, 2
      // Predicated region
      $region17: #{tpu_custom_call.1} parent=5 // pred_check
        %p78 = pneg %p77
      $region18: #{tpu_custom_call.1} parent=5 // pred_check_branch
        %80 = sbr.rel (%p78) target = $region20
      $region19: #{tpu_custom_call.1} parent=5 // pred_region
        _
      $region20: #{tpu_custom_call.1} parent=5 // pred_fallthru
        _
      %p81 = scmp.le.s32.totalorder 1, %s9
      %p82 = scmp.lt.s32.totalorder %s9, 3
      %p83 = pnand %p81, %p82
      %p84 = pneg %p83
      // Predicated region
      $region21: #{tpu_custom_call.1} parent=5 // pred_check
        _
      $region22: #{tpu_custom_call.1} parent=5 // pred_check_branch
        %86 = sbr.rel (%p83) target = $region24
      $region23: #{tpu_custom_call.1} parent=5 // pred_region
        %s87 = ssub.s32 %s9, 1
        // Predicated region
        $region25: #{tpu_custom_call.1} parent=23 // pred_check
          %p88 = pneg %p30
        $region26: #{tpu_custom_call.1} parent=23 // pred_check_branch
          %90 = sbr.rel (%p88) target = $region28
        $region27: #{tpu_custom_call.1} parent=23 // pred_region
          %91 = dma.done [#allocation3], 128
        $region28: #{tpu_custom_call.1} parent=23 // pred_fallthru
          _
        %p92 = pneg %p30
        %p93 = pneg %p27
        %p94 = pneg %p51
        %p95 = pneg %p48
        %v96 = vld [vmem:[#allocation2] sm:$0xff]
        %v97 = vmul.f32 %v96, 2.0
        %98 = vst [vmem:[#allocation5] sm:$0xff] %v97
        // Predicated region
        $region29: #{tpu_custom_call.1} parent=23 // pred_check
          %p99 = pneg %p48
        $region30: #{tpu_custom_call.1} parent=23 // pred_check_branch
          %101 = sbr.rel (%p99) target = $region32
        $region31: #{tpu_custom_call.1} parent=23 // pred_region
          %s103 = ssub.s32 128, 128
          %104 = vsyncadd [#allocation4], %s103
          %s106 = sshll.u32 [#allocation5], 4
          %s107 = int_to_ptr.vmem [resolvable:$true] %s106
          %109 = dma.vmem_to_hbm [thread:$0]  %s107, 128, %s1, [#allocation4]
        $region32: #{tpu_custom_call.1} parent=23 // pred_fallthru
          _
        // Predicated region
        $region33: #{tpu_custom_call.1} parent=23 // pred_check
          %p110 = pneg %p48
        $region34: #{tpu_custom_call.1} parent=23 // pred_check_branch
          %112 = sbr.rel (%p110) target = $region36
        $region35: #{tpu_custom_call.1} parent=23 // pred_region
          %113 = dma.done [#allocation4], 128
        $region36: #{tpu_custom_call.1} parent=23 // pred_fallthru
          _
      $region24: #{tpu_custom_call.1} parent=5 // pred_fallthru
        _
      %p114 = scmp.le.s32.totalorder 2, %s9
      // Predicated region
      $region37: #{tpu_custom_call.1} parent=5 // pred_check
        %p115 = pneg %p114
      $region38: #{tpu_custom_call.1} parent=5 // pred_check_branch
        %117 = sbr.rel (%p115) target = $region40
      $region39: #{tpu_custom_call.1} parent=5 // pred_region
        %s118 = ssub.s32 %s9, 2
      $region40: #{tpu_custom_call.1} parent=5 // pred_fallthru
        _
    $region6: #{tpu_custom_call.1} parent=1 // loop_footer
      %s13 = sadd.s32 1, %s9
    $region7: #{tpu_custom_call.1} parent=1 // loop_footer_branch
      %8 = sbr.rel target = $region3
    $region8: #{tpu_custom_call.1} parent=1 // loop_exit
      _
    %119 = vsyncpa [#allocation3], 1
    %s120 = scalar_lea.sflag [#allocation3], 1
    %121 = vsyncpa %s120, 1
    %122 = vsyncpa [#allocation4], 1
    %s123 = scalar_lea.sflag [#allocation4], 1
    %124 = vsyncpa %s123, 1

// kernel: tpu_custom_call.1
$region0: #{tpu_custom_call.1}
  #allocation0 [shape = 'u32[]', space=smem, size = 0x4, offset = 0x4, fixed_abs, tag = 'smem constant byte address 0x4 - core index']
  #allocation1 [shape = 'u32[144,128]{1,0:T(1,128)}', space=vmem, size = 0x12000, scoped, tag = 'internal scratch']
  #allocation2 [shape = 'bf16[8,32]{1,0:T(8,128)(2,1)}', space=vmem, size = 0x800, scoped, tag = 'scratch operand']
  %s0 = inlined_call_operand.vmem [shape: f32[2,8,32], index: 0, kind: input, shape index: {}]
  %s1 = inlined_call_operand.vmem [shape: f32[2,1,8], index: 1, kind: input, shape index: {}]
  %s2 = inlined_call_operand.vmem [shape: bf16[32,32], index: 2, kind: input, shape index: {}]
  %s3 = inlined_call_operand.hbm [shape: f32[1,32], index: 3, kind: input, shape index: {}]
  %s4 = inlined_call_operand.vmem [shape: bf16[32,32], index: 4, kind: input, shape index: {}]
  %s5 = inlined_call_operand.hbm [shape: f32[1,32], index: 5, kind: input, shape index: {}]
  %s6 = inlined_call_operand.vmem [shape: bf16[32,32], index: 6, kind: input, shape index: {}]
  %s7 = inlined_call_operand.hbm [shape: f32[1,32], index: 7, kind: input, shape index: {}]
  %s8 = inlined_call_operand.vmem [shape: bf16[32,32], index: 8, kind: input, shape index: {}]
  %s9 = inlined_call_operand.hbm [shape: f32[1,32], index: 9, kind: input, shape index: {}]
  %s10 = inlined_call_operand.vmem [shape: f32[1,32], index: 10, kind: input, shape index: {}]
  %s11 = inlined_call_operand.vmem [shape: f32[1,32], index: 11, kind: input, shape index: {}]
  %s12 = inlined_call_operand.vmem [shape: bf16[32,128], index: 12, kind: input, shape index: {}]
  %s13 = inlined_call_operand.vmem [shape: f32[1,128], index: 13, kind: input, shape index: {}]
  %s14 = inlined_call_operand.vmem [shape: bf16[128,32], index: 14, kind: input, shape index: {}]
  %s15 = inlined_call_operand.vmem [shape: f32[1,32], index: 15, kind: input, shape index: {}]
  %s16 = inlined_call_operand.vmem [shape: f32[1,32], index: 16, kind: input, shape index: {}]
  %s17 = inlined_call_operand.vmem [shape: f32[1,32], index: 17, kind: input, shape index: {}]
  %s18 = inlined_call_operand.hbm [shape: f32[2,8,32], index: 18, kind: output, shape index: {}]
  %s19 = sld [smem:[#allocation0]]
  $region121: #{tpu_custom_call.1} parent=0
    _
  %s21 = ssub.s32 1, %s19
  %s22 = scalar_select 0, %s21, %s19
  $region1: #{tpu_custom_call.1} parent=0
    #allocation3 [shape = 'u8[512]{0}', space=vmem, size = 0x400, scoped, tag = 'input window, operand 3, single buffered']
    #allocation4 [shape = 's32[2]{0}', space=sflag, size = 0x8, scoped, tag = 'scoped memory for tpu_custom_call.1']
    #allocation5 [shape = 's32[2]{0}', space=sflag, size = 0x8, scoped, tag = 'scoped memory for tpu_custom_call.1']
    #allocation6 [shape = 'u8[512]{0}', space=vmem, size = 0x400, scoped, tag = 'input window, operand 5, single buffered']
    #allocation7 [shape = 's32[1]{0}', space=sflag, size = 0x4, scoped, tag = 'scoped memory for tpu_custom_call.1']
    #allocation8 [shape = 'u8[512]{0}', space=vmem, size = 0x400, scoped, tag = 'input window, operand 7, single buffered']
    #allocation9 [shape = 'u8[512]{0}', space=vmem, size = 0x400, scoped, tag = 'input window, operand 9, single buffered']
    #allocation10 [shape = 's32[1]{0}', space=sflag, size = 0x4, scoped, tag = 'scoped memory for tpu_custom_call.1']
    #allocation11 [shape = 'u8[8192]{0}', space=vmem, size = 0x2000, scoped, tag = 'output window, operand 0']
    %23 = vsyncpa [#allocation4], 0
    %24 = vsyncpa [#allocation7], 0
    %25 = vsyncpa [#allocation10], 0
    %26 = vsyncpa [#allocation5], 0
    %s27 = scalar_lea.sflag [#allocation5], 1
    %28 = vsyncpa %s27, 0
    loop: start=0, step=1, limit=4
    $region2: #{tpu_custom_call.1} parent=1 // loop_pre_header
      _
    $region3: #{tpu_custom_call.1} parent=1 // loop_header
      %s30 = sphi 0, %s34
      %p31 = scmp.ge.s32.totalorder %s30, 4
      %s40 = sphi 0, %s42
      %s43 = sphi 0, %s40
      %s44 = sphi 0, %s43
      %s60 = sphi 0, %s44
      %s66 = sphi 0, %s68
      %s69 = sphi 0, %s66
      %s70 = sphi 0, %s69
      %s86 = sphi 0, %s70
      %s90 = sphi 0, %s90
      %s92 = sphi 0, %s90
      %s93 = sphi 0, %s92
      %s107 = sphi 0, %s93
      %s111 = sphi 0, %s111
      %s113 = sphi 0, %s111
      %s114 = sphi 0, %s113
      %s128 = sphi 0, %s114
      %s132 = sphi 0, %s132
      %s134 = sphi 0, %s132
      %s135 = sphi 0, %s134
      %s149 = sphi 0, %s135
      %s153 = sphi 0, %s153
      %s155 = sphi 0, %s153
      %s156 = sphi 0, %s155
      %s170 = sphi 0, %s156
      %s174 = sphi 0, %s174
      %s176 = sphi 0, %s174
      %s177 = sphi 0, %s176
      %s191 = sphi 0, %s177
      %s195 = sphi 0, %s195
      %s197 = sphi 0, %s195
      %s198 = sphi 0, %s197
      %s212 = sphi 0, %s198
      %s216 = sphi 0, %s216
      %s218 = sphi 0, %s216
      %s219 = sphi 0, %s218
      %s233 = sphi 0, %s219
      %s237 = sphi 0, %s237
      %s239 = sphi 0, %s237
      %s240 = sphi 0, %s239
      %s254 = sphi 0, %s240
      %s258 = sphi 0, %s258
      %s260 = sphi 0, %s258
      %s261 = sphi 0, %s260
      %s275 = sphi 0, %s261
      %s279 = sphi 0, %s279
      %s281 = sphi 0, %s279
      %s282 = sphi 0, %s281
      %s296 = sphi 0, %s282
      %s300 = sphi 0, %s300
      %s302 = sphi 0, %s300
      %s303 = sphi 0, %s302
      %s317 = sphi 0, %s303
      %s321 = sphi 0, %s321
      %s323 = sphi 0, %s321
      %s324 = sphi 0, %s323
      %s338 = sphi 0, %s324
      %s342 = sphi 0, %s342
      %s344 = sphi 0, %s342
      %s345 = sphi 0, %s344
      %s359 = sphi 0, %s345
      %s363 = sphi 0, %s363
      %s365 = sphi 0, %s363
      %s366 = sphi 0, %s365
      %s380 = sphi 0, %s366
      %s384 = sphi 0, %s384
      %s386 = sphi 0, %s384
      %s387 = sphi 0, %s386
      %s401 = sphi 0, %s387
      %s405 = sphi 0, %s405
      %s407 = sphi 0, %s405
      %s408 = sphi 0, %s407
      %s422 = sphi 0, %s408
      %s428 = sphi 0, %s430
      %s431 = sphi 0, %s428
      %s432 = sphi 0, %s431
      %s448 = sphi 0, %s432
    $region4: #{tpu_custom_call.1} parent=1 // loop_header_branch
      %33 = sbr.rel (%p31) target = $region8
    $region5: #{tpu_custom_call.1} parent=1 // loop_body
      %s35 = ssub.s32 %s30, 1
      %s36 = ssub.s32 %s30, 2
      %s37 = sadd.s32 %s30, 1
      %s38 = ssub.s32 %s30, %s37
      %p39 = scmp.eq.s32.totalorder %s38, 0
      %s41 = sadd.s32 %s40, 1
      %s42 = scalar_select %p39, %s40, %s41
      %p45 = pneg %p39
      %p46 = scmp.eq.s32.totalorder %s30, 1
      %p47 = por %p45, %p46
      %p48 = scmp.ne.s32.totalorder %s40, %s43
      %p49 = scmp.eq.s32.totalorder %s30, 0
      %p50 = por %p48, %p49
      %p51 = scmp.ne.s32.totalorder %s40, %s43
      %p52 = scmp.eq.s32.totalorder %s35, 1
      %p53 = por %p51, %p52
      %p54 = scmp.ne.s32.totalorder %s43, %s44
      %p55 = scmp.eq.s32.totalorder %s35, 0
      %p56 = por %p54, %p55
      %p57 = scmp.ne.s32.totalorder %s43, %s44
      %p58 = scmp.eq.s32.totalorder %s36, 1
      %p59 = por %p57, %p58
      %p61 = scmp.ne.s32.totalorder %s44, %s60
      %p62 = scmp.eq.s32.totalorder %s36, 0
      %p63 = por %p61, %p62
      %s64 = ssub.s32 %s30, %s37
      %p65 = scmp.eq.s32.totalorder %s64, 0
      %s67 = sadd.s32 %s66, 1
      %s68 = scalar_select %p65, %s66, %s67
      %p71 = pneg %p65
      %p72 = scmp.eq.s32.totalorder %s30, 1
      %p73 = por %p71, %p72
      %p74 = scmp.ne.s32.totalorder %s66, %s69
      %p75 = scmp.eq.s32.totalorder %s30, 0
      %p76 = por %p74, %p75
      %p77 = scmp.ne.s32.totalorder %s66, %s69
      %p78 = scmp.eq.s32.totalorder %s35, 1
      %p79 = por %p77, %p78
      %p80 = scmp.ne.s32.totalorder %s69, %s70
      %p81 = scmp.eq.s32.totalorder %s35, 0
      %p82 = por %p80, %p81
      %p83 = scmp.ne.s32.totalorder %s69, %s70
      %p84 = scmp.eq.s32.totalorder %s36, 1
      %p85 = por %p83, %p84
      %p87 = scmp.ne.s32.totalorder %s70, %s86
      %p88 = scmp.eq.s32.totalorder %s36, 0
      %p89 = por %p87, %p88
      %s91 = sadd.s32 %s90, 1
      %p94 = scmp.eq.s32.totalorder %s30, 1
      %p95 = scmp.ne.s32.totalorder %s90, %s92
      %p96 = scmp.eq.s32.totalorder %s30, 0
      %p97 = por %p95, %p96
      %p98 = scmp.ne.s32.totalorder %s90, %s92
      %p99 = scmp.eq.s32.totalorder %s35, 1
      %p100 = por %p98, %p99
      %p101 = scmp.ne.s32.totalorder %s92, %s93
      %p102 = scmp.eq.s32.totalorder %s35, 0
      %p103 = por %p101, %p102
      %p104 = scmp.ne.s32.totalorder %s92, %s93
      %p105 = scmp.eq.s32.totalorder %s36, 1
      %p106 = por %p104, %p105
      %p108 = scmp.ne.s32.totalorder %s93, %s107
      %p109 = scmp.eq.s32.totalorder %s36, 0
      %p110 = por %p108, %p109
      %s112 = sadd.s32 %s111, 1
      %p115 = scmp.eq.s32.totalorder %s30, 1
      %p116 = scmp.ne.s32.totalorder %s111, %s113
      %p117 = scmp.eq.s32.totalorder %s30, 0
      %p118 = por %p116, %p117
      %p119 = scmp.ne.s32.totalorder %s111, %s113
      %p120 = scmp.eq.s32.totalorder %s35, 1
      %p121 = por %p119, %p120
      %p122 = scmp.ne.s32.totalorder %s113, %s114
      %p123 = scmp.eq.s32.totalorder %s35, 0
      %p124 = por %p122, %p123
      %p125 = scmp.ne.s32.totalorder %s113, %s114
      %p126 = scmp.eq.s32.totalorder %s36, 1
      %p127 = por %p125, %p126
      %p129 = scmp.ne.s32.totalorder %s114, %s128
      %p130 = scmp.eq.s32.totalorder %s36, 0
      %p131 = por %p129, %p130
      %s133 = sadd.s32 %s132, 1
      %p136 = scmp.eq.s32.totalorder %s30, 1
      %p137 = scmp.ne.s32.totalorder %s132, %s134
      %p138 = scmp.eq.s32.totalorder %s30, 0
      %p139 = por %p137, %p138
      %p140 = scmp.ne.s32.totalorder %s132, %s134
      %p141 = scmp.eq.s32.totalorder %s35, 1
      %p142 = por %p140, %p141
      %p143 = scmp.ne.s32.totalorder %s134, %s135
      %p144 = scmp.eq.s32.totalorder %s35, 0
      %p145 = por %p143, %p144
      %p146 = scmp.ne.s32.totalorder %s134, %s135
      %p147 = scmp.eq.s32.totalorder %s36, 1
      %p148 = por %p146, %p147
      %p150 = scmp.ne.s32.totalorder %s135, %s149
      %p151 = scmp.eq.s32.totalorder %s36, 0
      %p152 = por %p150, %p151
      %s154 = sadd.s32 %s153, 1
      %p157 = scmp.eq.s32.totalorder %s30, 1
      %p158 = scmp.ne.s32.totalorder %s153, %s155
      %p159 = scmp.eq.s32.totalorder %s30, 0
      %p160 = por %p158, %p159
      %p161 = scmp.ne.s32.totalorder %s153, %s155
      %p162 = scmp.eq.s32.totalorder %s35, 1
      %p163 = por %p161, %p162
      %p164 = scmp.ne.s32.totalorder %s155, %s156
      %p165 = scmp.eq.s32.totalorder %s35, 0
      %p166 = por %p164, %p165
      %p167 = scmp.ne.s32.totalorder %s155, %s156
      %p168 = scmp.eq.s32.totalorder %s36, 1
      %p169 = por %p167, %p168
      %p171 = scmp.ne.s32.totalorder %s156, %s170
      %p172 = scmp.eq.s32.totalorder %s36, 0
      %p173 = por %p171, %p172
      %s175 = sadd.s32 %s174, 1
      %p178 = scmp.eq.s32.totalorder %s30, 1
      %p179 = scmp.ne.s32.totalorder %s174, %s176
      %p180 = scmp.eq.s32.totalorder %s30, 0
      %p181 = por %p179, %p180
      %p182 = scmp.ne.s32.totalorder %s174, %s176
      %p183 = scmp.eq.s32.totalorder %s35, 1
      %p184 = por %p182, %p183
      %p185 = scmp.ne.s32.totalorder %s176, %s177
      %p186 = scmp.eq.s32.totalorder %s35, 0
      %p187 = por %p185, %p186
      %p188 = scmp.ne.s32.totalorder %s176, %s177
      %p189 = scmp.eq.s32.totalorder %s36, 1
      %p190 = por %p188, %p189
      %p192 = scmp.ne.s32.totalorder %s177, %s191
      %p193 = scmp.eq.s32.totalorder %s36, 0
      %p194 = por %p192, %p193
      %s196 = sadd.s32 %s195, 1
      %p199 = scmp.eq.s32.totalorder %s30, 1
      %p200 = scmp.ne.s32.totalorder %s195, %s197
      %p201 = scmp.eq.s32.totalorder %s30, 0
      %p202 = por %p200, %p201
      %p203 = scmp.ne.s32.totalorder %s195, %s197
      %p204 = scmp.eq.s32.totalorder %s35, 1
      %p205 = por %p203, %p204
      %p206 = scmp.ne.s32.totalorder %s197, %s198
      %p207 = scmp.eq.s32.totalorder %s35, 0
      %p208 = por %p206, %p207
      %p209 = scmp.ne.s32.totalorder %s197, %s198
      %p210 = scmp.eq.s32.totalorder %s36, 1
      %p211 = por %p209, %p210
      %p213 = scmp.ne.s32.totalorder %s198, %s212
      %p214 = scmp.eq.s32.totalorder %s36, 0
      %p215 = por %p213, %p214
      %s217 = sadd.s32 %s216, 1
      %p220 = scmp.eq.s32.totalorder %s30, 1
      %p221 = scmp.ne.s32.totalorder %s216, %s218
      %p222 = scmp.eq.s32.totalorder %s30, 0
      %p223 = por %p221, %p222
      %p224 = scmp.ne.s32.totalorder %s216, %s218
      %p225 = scmp.eq.s32.totalorder %s35, 1
      %p226 = por %p224, %p225
      %p227 = scmp.ne.s32.totalorder %s218, %s219
      %p228 = scmp.eq.s32.totalorder %s35, 0
      %p229 = por %p227, %p228
      %p230 = scmp.ne.s32.totalorder %s218, %s219
      %p231 = scmp.eq.s32.totalorder %s36, 1
      %p232 = por %p230, %p231
      %p234 = scmp.ne.s32.totalorder %s219, %s233
      %p235 = scmp.eq.s32.totalorder %s36, 0
      %p236 = por %p234, %p235
      %s238 = sadd.s32 %s237, 1
      %p241 = scmp.eq.s32.totalorder %s30, 1
      %p242 = scmp.ne.s32.totalorder %s237, %s239
      %p243 = scmp.eq.s32.totalorder %s30, 0
      %p244 = por %p242, %p243
      %p245 = scmp.ne.s32.totalorder %s237, %s239
      %p246 = scmp.eq.s32.totalorder %s35, 1
      %p247 = por %p245, %p246
      %p248 = scmp.ne.s32.totalorder %s239, %s240
      %p249 = scmp.eq.s32.totalorder %s35, 0
      %p250 = por %p248, %p249
      %p251 = scmp.ne.s32.totalorder %s239, %s240
      %p252 = scmp.eq.s32.totalorder %s36, 1
      %p253 = por %p251, %p252
      %p255 = scmp.ne.s32.totalorder %s240, %s254
      %p256 = scmp.eq.s32.totalorder %s36, 0
      %p257 = por %p255, %p256
      %s259 = sadd.s32 %s258, 1
      %p262 = scmp.eq.s32.totalorder %s30, 1
      %p263 = scmp.ne.s32.totalorder %s258, %s260
      %p264 = scmp.eq.s32.totalorder %s30, 0
      %p265 = por %p263, %p264
      %p266 = scmp.ne.s32.totalorder %s258, %s260
      %p267 = scmp.eq.s32.totalorder %s35, 1
      %p268 = por %p266, %p267
      %p269 = scmp.ne.s32.totalorder %s260, %s261
      %p270 = scmp.eq.s32.totalorder %s35, 0
      %p271 = por %p269, %p270
      %p272 = scmp.ne.s32.totalorder %s260, %s261
      %p273 = scmp.eq.s32.totalorder %s36, 1
      %p274 = por %p272, %p273
      %p276 = scmp.ne.s32.totalorder %s261, %s275
      %p277 = scmp.eq.s32.totalorder %s36, 0
      %p278 = por %p276, %p277
      %s280 = sadd.s32 %s279, 1
      %p283 = scmp.eq.s32.totalorder %s30, 1
      %p284 = scmp.ne.s32.totalorder %s279, %s281
      %p285 = scmp.eq.s32.totalorder %s30, 0
      %p286 = por %p284, %p285
      %p287 = scmp.ne.s32.totalorder %s279, %s281
      %p288 = scmp.eq.s32.totalorder %s35, 1
      %p289 = por %p287, %p288
      %p290 = scmp.ne.s32.totalorder %s281, %s282
      %p291 = scmp.eq.s32.totalorder %s35, 0
      %p292 = por %p290, %p291
      %p293 = scmp.ne.s32.totalorder %s281, %s282
      %p294 = scmp.eq.s32.totalorder %s36, 1
      %p295 = por %p293, %p294
      %p297 = scmp.ne.s32.totalorder %s282, %s296
      %p298 = scmp.eq.s32.totalorder %s36, 0
      %p299 = por %p297, %p298
      %s301 = sadd.s32 %s300, 1
      %p304 = scmp.eq.s32.totalorder %s30, 1
      %p305 = scmp.ne.s32.totalorder %s300, %s302
      %p306 = scmp.eq.s32.totalorder %s30, 0
      %p307 = por %p305, %p306
      %p308 = scmp.ne.s32.totalorder %s300, %s302
      %p309 = scmp.eq.s32.totalorder %s35, 1
      %p310 = por %p308, %p309
      %p311 = scmp.ne.s32.totalorder %s302, %s303
      %p312 = scmp.eq.s32.totalorder %s35, 0
      %p313 = por %p311, %p312
      %p314 = scmp.ne.s32.totalorder %s302, %s303
      %p315 = scmp.eq.s32.totalorder %s36, 1
      %p316 = por %p314, %p315
      %p318 = scmp.ne.s32.totalorder %s303, %s317
      %p319 = scmp.eq.s32.totalorder %s36, 0
      %p320 = por %p318, %p319
      %s322 = sadd.s32 %s321, 1
      %p325 = scmp.eq.s32.totalorder %s30, 1
      %p326 = scmp.ne.s32.totalorder %s321, %s323
      %p327 = scmp.eq.s32.totalorder %s30, 0
      %p328 = por %p326, %p327
      %p329 = scmp.ne.s32.totalorder %s321, %s323
      %p330 = scmp.eq.s32.totalorder %s35, 1
      %p331 = por %p329, %p330
      %p332 = scmp.ne.s32.totalorder %s323, %s324
      %p333 = scmp.eq.s32.totalorder %s35, 0
      %p334 = por %p332, %p333
      %p335 = scmp.ne.s32.totalorder %s323, %s324
      %p336 = scmp.eq.s32.totalorder %s36, 1
      %p337 = por %p335, %p336
      %p339 = scmp.ne.s32.totalorder %s324, %s338
      %p340 = scmp.eq.s32.totalorder %s36, 0
      %p341 = por %p339, %p340
      %s343 = sadd.s32 %s342, 1
      %p346 = scmp.eq.s32.totalorder %s30, 1
      %p347 = scmp.ne.s32.totalorder %s342, %s344
      %p348 = scmp.eq.s32.totalorder %s30, 0
      %p349 = por %p347, %p348
      %p350 = scmp.ne.s32.totalorder %s342, %s344
      %p351 = scmp.eq.s32.totalorder %s35, 1
      %p352 = por %p350, %p351
      %p353 = scmp.ne.s32.totalorder %s344, %s345
      %p354 = scmp.eq.s32.totalorder %s35, 0
      %p355 = por %p353, %p354
      %p356 = scmp.ne.s32.totalorder %s344, %s345
      %p357 = scmp.eq.s32.totalorder %s36, 1
      %p358 = por %p356, %p357
      %p360 = scmp.ne.s32.totalorder %s345, %s359
      %p361 = scmp.eq.s32.totalorder %s36, 0
      %p362 = por %p360, %p361
      %s364 = sadd.s32 %s363, 1
      %p367 = scmp.eq.s32.totalorder %s30, 1
      %p368 = scmp.ne.s32.totalorder %s363, %s365
      %p369 = scmp.eq.s32.totalorder %s30, 0
      %p370 = por %p368, %p369
      %p371 = scmp.ne.s32.totalorder %s363, %s365
      %p372 = scmp.eq.s32.totalorder %s35, 1
      %p373 = por %p371, %p372
      %p374 = scmp.ne.s32.totalorder %s365, %s366
      %p375 = scmp.eq.s32.totalorder %s35, 0
      %p376 = por %p374, %p375
      %p377 = scmp.ne.s32.totalorder %s365, %s366
      %p378 = scmp.eq.s32.totalorder %s36, 1
      %p379 = por %p377, %p378
      %p381 = scmp.ne.s32.totalorder %s366, %s380
      %p382 = scmp.eq.s32.totalorder %s36, 0
      %p383 = por %p381, %p382
      %s385 = sadd.s32 %s384, 1
      %p388 = scmp.eq.s32.totalorder %s30, 1
      %p389 = scmp.ne.s32.totalorder %s384, %s386
      %p390 = scmp.eq.s32.totalorder %s30, 0
      %p391 = por %p389, %p390
      %p392 = scmp.ne.s32.totalorder %s384, %s386
      %p393 = scmp.eq.s32.totalorder %s35, 1
      %p394 = por %p392, %p393
      %p395 = scmp.ne.s32.totalorder %s386, %s387
      %p396 = scmp.eq.s32.totalorder %s35, 0
      %p397 = por %p395, %p396
      %p398 = scmp.ne.s32.totalorder %s386, %s387
      %p399 = scmp.eq.s32.totalorder %s36, 1
      %p400 = por %p398, %p399
      %p402 = scmp.ne.s32.totalorder %s387, %s401
      %p403 = scmp.eq.s32.totalorder %s36, 0
      %p404 = por %p402, %p403
      %s406 = sadd.s32 %s405, 1
      %p409 = scmp.eq.s32.totalorder %s30, 1
      %p410 = scmp.ne.s32.totalorder %s405, %s407
      %p411 = scmp.eq.s32.totalorder %s30, 0
      %p412 = por %p410, %p411
      %p413 = scmp.ne.s32.totalorder %s405, %s407
      %p414 = scmp.eq.s32.totalorder %s35, 1
      %p415 = por %p413, %p414
      %p416 = scmp.ne.s32.totalorder %s407, %s408
      %p417 = scmp.eq.s32.totalorder %s35, 0
      %p418 = por %p416, %p417
      %p419 = scmp.ne.s32.totalorder %s407, %s408
      %p420 = scmp.eq.s32.totalorder %s36, 1
      %p421 = por %p419, %p420
      %p423 = scmp.ne.s32.totalorder %s408, %s422
      %p424 = scmp.eq.s32.totalorder %s36, 0
      %p425 = por %p423, %p424
      %s426 = ssub.s32 %s30, %s37
      %p427 = scmp.eq.s32.totalorder %s426, 0
      %s429 = sadd.s32 %s428, 1
      %s430 = scalar_select %p427, %s428, %s429
      %p433 = pneg %p427
      %p434 = scmp.eq.s32.totalorder %s30, 1
      %p435 = por %p433, %p434
      %p436 = scmp.ne.s32.totalorder %s428, %s431
      %p437 = scmp.eq.s32.totalorder %s30, 0
      %p438 = por %p436, %p437
      %p439 = scmp.ne.s32.totalorder %s428, %s431
      %p440 = scmp.eq.s32.totalorder %s35, 1
      %p441 = por %p439, %p440
      %p442 = scmp.ne.s32.totalorder %s431, %s432
      %p443 = scmp.eq.s32.totalorder %s35, 0
      %p444 = por %p442, %p443
      %p445 = scmp.ne.s32.totalorder %s431, %s432
      %p446 = scmp.eq.s32.totalorder %s36, 1
      %p447 = por %p445, %p446
      %p449 = scmp.ne.s32.totalorder %s432, %s448
      %p450 = scmp.eq.s32.totalorder %s36, 0
      %p451 = por %p449, %p450
      %p452 = scmp.le.s32.totalorder 1, %s30
      %p453 = scmp.lt.s32.totalorder %s30, 3
      %p454 = pnand %p452, %p453
      %p455 = pneg %p454
      // Predicated region
      $region9: #{tpu_custom_call.1} parent=5 // pred_check
        _
      $region10: #{tpu_custom_call.1} parent=5 // pred_check_branch
        %457 = sbr.rel (%p454) target = $region12
      $region11: #{tpu_custom_call.1} parent=5 // pred_region
        %s458 = ssub.s32 %s30, 1
        // Predicated region
        $region13: #{tpu_custom_call.1} parent=11 // pred_check
          %p459 = pneg %p103
        $region14: #{tpu_custom_call.1} parent=11 // pred_check_branch
          %461 = sbr.rel (%p459) target = $region16
        $region15: #{tpu_custom_call.1} parent=11 // pred_region
          _
        $region16: #{tpu_custom_call.1} parent=11 // pred_fallthru
          _
        // Predicated region
        $region17: #{tpu_custom_call.1} parent=11 // pred_check
          %p462 = pneg %p124
        $region18: #{tpu_custom_call.1} parent=11 // pred_check_branch
          %464 = sbr.rel (%p462) target = $region20
        $region19: #{tpu_custom_call.1} parent=11 // pred_region
          %s466 = ssub.s32 16, 16
          %467 = vsyncadd [#allocation4], %s466
          %s469 = sshll.u32 [#allocation3], 4
          %s470 = int_to_ptr.vmem [resolvable:$true] %s469
          %472 = dma.hbm_to_vmem [thread:$0]  %s3, 16, %s470, [#allocation4]
        $region20: #{tpu_custom_call.1} parent=11 // pred_fallthru
          _
        // Predicated region
        $region21: #{tpu_custom_call.1} parent=11 // pred_check
          %p473 = pneg %p145
        $region22: #{tpu_custom_call.1} parent=11 // pred_check_branch
          %475 = sbr.rel (%p473) target = $region24
        $region23: #{tpu_custom_call.1} parent=11 // pred_region
          _
        $region24: #{tpu_custom_call.1} parent=11 // pred_fallthru
          _
        // Predicated region
        $region25: #{tpu_custom_call.1} parent=11 // pred_check
          %p476 = pneg %p166
        $region26: #{tpu_custom_call.1} parent=11 // pred_check_branch
          %478 = sbr.rel (%p476) target = $region28
        $region27: #{tpu_custom_call.1} parent=11 // pred_region
          %s480 = ssub.s32 16, 16
          %481 = vsyncadd [#allocation7], %s480
          %s483 = sshll.u32 [#allocation6], 4
          %s484 = int_to_ptr.vmem [resolvable:$true] %s483
          %486 = dma.hbm_to_vmem [thread:$0]  %s5, 16, %s484, [#allocation7]
        $region28: #{tpu_custom_call.1} parent=11 // pred_fallthru
          _
        // Predicated region
        $region29: #{tpu_custom_call.1} parent=11 // pred_check
          %p487 = pneg %p187
        $region30: #{tpu_custom_call.1} parent=11 // pred_check_branch
          %489 = sbr.rel (%p487) target = $region32
        $region31: #{tpu_custom_call.1} parent=11 // pred_region
          _
        $region32: #{tpu_custom_call.1} parent=11 // pred_fallthru
          _
        // Predicated region
        $region33: #{tpu_custom_call.1} parent=11 // pred_check
          %p490 = pneg %p208
        $region34: #{tpu_custom_call.1} parent=11 // pred_check_branch
          %492 = sbr.rel (%p490) target = $region36
        $region35: #{tpu_custom_call.1} parent=11 // pred_region
          %s494 = ssub.s32 16, 16
          %495 = vsyncadd [#allocation7], %s494
          %s497 = sshll.u32 [#allocation8], 4
          %s498 = int_to_ptr.vmem [resolvable:$true] %s497
          %500 = dma.hbm_to_vmem [thread:$0]  %s7, 16, %s498, [#allocation7]
        $region36: #{tpu_custom_call.1} parent=11 // pred_fallthru
          _
        // Predicated region
        $region37: #{tpu_custom_call.1} parent=11 // pred_check
          %p501 = pneg %p229
        $region38: #{tpu_custom_call.1} parent=11 // pred_check_branch
          %503 = sbr.rel (%p501) target = $region40
        $region39: #{tpu_custom_call.1} parent=11 // pred_region
          _
        $region40: #{tpu_custom_call.1} parent=11 // pred_fallthru
          _
        // Predicated region
        $region41: #{tpu_custom_call.1} parent=11 // pred_check
          %p504 = pneg %p250
        $region42: #{tpu_custom_call.1} parent=11 // pred_check_branch
          %506 = sbr.rel (%p504) target = $region44
        $region43: #{tpu_custom_call.1} parent=11 // pred_region
          %s508 = ssub.s32 16, 16
          %509 = vsyncadd [#allocation10], %s508
          %s511 = sshll.u32 [#allocation9], 4
          %s512 = int_to_ptr.vmem [resolvable:$true] %s511
          %514 = dma.hbm_to_vmem [thread:$0]  %s9, 16, %s512, [#allocation10]
        $region44: #{tpu_custom_call.1} parent=11 // pred_fallthru
          _
        // Predicated region
        $region45: #{tpu_custom_call.1} parent=11 // pred_check
          %p515 = pneg %p271
        $region46: #{tpu_custom_call.1} parent=11 // pred_check_branch
          %517 = sbr.rel (%p515) target = $region48
        $region47: #{tpu_custom_call.1} parent=11 // pred_region
          _
        $region48: #{tpu_custom_call.1} parent=11 // pred_fallthru
          _
        // Predicated region
        $region49: #{tpu_custom_call.1} parent=11 // pred_check
          %p518 = pneg %p292
        $region50: #{tpu_custom_call.1} parent=11 // pred_check_branch
          %520 = sbr.rel (%p518) target = $region52
        $region51: #{tpu_custom_call.1} parent=11 // pred_region
          _
        $region52: #{tpu_custom_call.1} parent=11 // pred_fallthru
          _
        // Predicated region
        $region53: #{tpu_custom_call.1} parent=11 // pred_check
          %p521 = pneg %p313
        $region54: #{tpu_custom_call.1} parent=11 // pred_check_branch
          %523 = sbr.rel (%p521) target = $region56
        $region55: #{tpu_custom_call.1} parent=11 // pred_region
          _
        $region56: #{tpu_custom_call.1} parent=11 // pred_fallthru
          _
        // Predicated region
        $region57: #{tpu_custom_call.1} parent=11 // pred_check
          %p524 = pneg %p334
        $region58: #{tpu_custom_call.1} parent=11 // pred_check_branch
          %526 = sbr.rel (%p524) target = $region60
        $region59: #{tpu_custom_call.1} parent=11 // pred_region
          _
        $region60: #{tpu_custom_call.1} parent=11 // pred_fallthru
          _
        // Predicated region
        $region61: #{tpu_custom_call.1} parent=11 // pred_check
          %p527 = pneg %p355
        $region62: #{tpu_custom_call.1} parent=11 // pred_check_branch
          %529 = sbr.rel (%p527) target = $region64
        $region63: #{tpu_custom_call.1} parent=11 // pred_region
          _
        $region64: #{tpu_custom_call.1} parent=11 // pred_fallthru
          _
        // Predicated region
        $region65: #{tpu_custom_call.1} parent=11 // pred_check
          %p530 = pneg %p376
        $region66: #{tpu_custom_call.1} parent=11 // pred_check_branch
          %532 = sbr.rel (%p530) target = $region68
        $region67: #{tpu_custom_call.1} parent=11 // pred_region
          _
        $region68: #{tpu_custom_call.1} parent=11 // pred_fallthru
          _
        // Predicated region
        $region69: #{tpu_custom_call.1} parent=11 // pred_check
          %p533 = pneg %p397
        $region70: #{tpu_custom_call.1} parent=11 // pred_check_branch
          %535 = sbr.rel (%p533) target = $region72
        $region71: #{tpu_custom_call.1} parent=11 // pred_region
          _
        $region72: #{tpu_custom_call.1} parent=11 // pred_fallthru
          _
        // Predicated region
        $region73: #{tpu_custom_call.1} parent=11 // pred_check
          %p536 = pneg %p418
        $region74: #{tpu_custom_call.1} parent=11 // pred_check_branch
          %538 = sbr.rel (%p536) target = $region76
        $region75: #{tpu_custom_call.1} parent=11 // pred_region
          _
        $region76: #{tpu_custom_call.1} parent=11 // pred_fallthru
          _
      $region12: #{tpu_custom_call.1} parent=5 // pred_fallthru
        _
      %p539 = scmp.lt.s32.totalorder %s30, 2
      // Predicated region
      $region77: #{tpu_custom_call.1} parent=5 // pred_check
        %p540 = pneg %p539
      $region78: #{tpu_custom_call.1} parent=5 // pred_check_branch
        %542 = sbr.rel (%p540) target = $region80
      $region79: #{tpu_custom_call.1} parent=5 // pred_region
        // Predicated region
        $region81: #{tpu_custom_call.1} parent=79 // pred_check
          %p543 = pneg %p50
        $region82: #{tpu_custom_call.1} parent=79 // pred_check_branch
          %545 = sbr.rel (%p543) target = $region84
        $region83: #{tpu_custom_call.1} parent=79 // pred_region
          %p546 = scmp.lt.s32.totalorder %s30, 1
          %s547 = scalar_select %p546, %s30, 1
          %s548 = smul.addr %s547, 8
          %s549 = scalar_lea.vmem %s0, %s548
        $region84: #{tpu_custom_call.1} parent=79 // pred_fallthru
          _
        // Predicated region
        $region85: #{tpu_custom_call.1} parent=79 // pred_check
          %p550 = pneg %p76
        $region86: #{tpu_custom_call.1} parent=79 // pred_check_branch
          %552 = sbr.rel (%p550) target = $region88
        $region87: #{tpu_custom_call.1} parent=79 // pred_region
          %p553 = scmp.lt.s32.totalorder %s30, 1
          %s554 = scalar_select %p553, %s30, 1
          %s555 = scalar_lea.vmem %s1, %s554
        $region88: #{tpu_custom_call.1} parent=79 // pred_fallthru
          _
      $region80: #{tpu_custom_call.1} parent=5 // pred_fallthru
        _
      %p556 = scmp.le.s32.totalorder 1, %s30
      %p557 = scmp.lt.s32.totalorder %s30, 3
      %p558 = pnand %p556, %p557
      %p559 = pneg %p558
      // Predicated region
      $region89: #{tpu_custom_call.1} parent=5 // pred_check
        _
      $region90: #{tpu_custom_call.1} parent=5 // pred_check_branch
        %561 = sbr.rel (%p558) target = $region92
      $region91: #{tpu_custom_call.1} parent=5 // pred_region
        %s562 = ssub.s32 %s30, 1
        // Predicated region
        $region93: #{tpu_custom_call.1} parent=91 // pred_check
          %p563 = pneg %p124
        $region94: #{tpu_custom_call.1} parent=91 // pred_check_branch
          %565 = sbr.rel (%p563) target = $region96
        $region95: #{tpu_custom_call.1} parent=91 // pred_region
          %566 = dma.done [#allocation4], 16
        $region96: #{tpu_custom_call.1} parent=91 // pred_fallthru
          _
        // Predicated region
        $region97: #{tpu_custom_call.1} parent=91 // pred_check
          %p567 = pneg %p166
        $region98: #{tpu_custom_call.1} parent=91 // pred_check_branch
          %569 = sbr.rel (%p567) target = $region100
        $region99: #{tpu_custom_call.1} parent=91 // pred_region
          %570 = dma.done [#allocation7], 16
        $region100: #{tpu_custom_call.1} parent=91 // pred_fallthru
          _
        // Predicated region
        $region101: #{tpu_custom_call.1} parent=91 // pred_check
          %p571 = pneg %p208
        $region102: #{tpu_custom_call.1} parent=91 // pred_check_branch
          %573 = sbr.rel (%p571) target = $region104
        $region103: #{tpu_custom_call.1} parent=91 // pred_region
          %574 = dma.done [#allocation7], 16
        $region104: #{tpu_custom_call.1} parent=91 // pred_fallthru
          _
        // Predicated region
        $region105: #{tpu_custom_call.1} parent=91 // pred_check
          %p575 = pneg %p250
        $region106: #{tpu_custom_call.1} parent=91 // pred_check_branch
          %577 = sbr.rel (%p575) target = $region108
        $region107: #{tpu_custom_call.1} parent=91 // pred_region
          %578 = dma.done [#allocation10], 16
        $region108: #{tpu_custom_call.1} parent=91 // pred_fallthru
          _
        %p579 = scmp.lt.s32.totalorder %s35, 1
        %s580 = scalar_select %p579, %s35, 1
        %s581 = smul.addr %s580, 8
        %s582 = scalar_lea.vmem %s0, %s581
        %p583 = pneg %p56
        %p584 = pneg %p53
        %p585 = scmp.lt.s32.totalorder %s35, 1
        %s586 = scalar_select %p585, %s35, 1
        %s587 = scalar_lea.vmem %s1, %s586
        %p588 = pneg %p82
        %p589 = pneg %p79
        %p590 = pneg %p103
        %p591 = pneg %p100
        %p592 = pneg %p124
        %p593 = pneg %p121
        %p594 = pneg %p145
        %p595 = pneg %p142
        %p596 = pneg %p166
        %p597 = pneg %p163
        %p598 = pneg %p187
        %p599 = pneg %p184
        %p600 = pneg %p208
        %p601 = pneg %p205
        %p602 = pneg %p229
        %p603 = pneg %p226
        %p604 = pneg %p250
        %p605 = pneg %p247
        %p606 = pneg %p271
        %p607 = pneg %p268
        %p608 = pneg %p292
        %p609 = pneg %p289
        %p610 = pneg %p313
        %p611 = pneg %p310
        %p612 = pneg %p334
        %p613 = pneg %p331
        %p614 = pneg %p355
        %p615 = pneg %p352
        %p616 = pneg %p376
        %p617 = pneg %p373
        %p618 = pneg %p397
        %p619 = pneg %p394
        %p620 = pneg %p418
        %p621 = pneg %p415
        %p622 = pneg %p444
        %p623 = pneg %p441
        %s624 = sand.u32 %s431, 1
        %s625 = scalar_lea.sflag [#allocation5], %s624
        %s626 = sand.u32 %s431, 1
        %s627 = smul.addr %s626, 8
        %s628 = scalar_lea.vmem [#allocation11], %s627
        %p629 = scmp.lt.s32.totalorder %s35, 1
        %s630 = scalar_select %p629, %s35, 1
        %s631 = smul.addr %s630, 8
        %s632 = scalar_lea.vmem %s0, %s631
        %p633 = scmp.lt.s32.totalorder %s35, 1
        %s634 = scalar_select %p633, %s35, 1
        %s635 = scalar_lea.vmem %s1, %s634
        %v637 = vld [vmem:[%s632] sm:$0xff]
        %v638 = vld [vmem:[%s635] sm:$0x1]
        %v639 = vpack.c.bf16 %v637, %v637
        %v640 = vld [vmem:[%s2] sm:$0xf]
        %v641 = vld [vmem:[%s2 + $0x4] sm:$0xf]
        %v642 = vld [vmem:[%s2 + $0x8] sm:$0xf]
        %v643 = vld [vmem:[%s2 + $0xc] sm:$0xf]
        %v644 = vld [vmem:[#allocation3] sm:$0x1]
        %v646 = vlaneseq
        %v647 = vshrl.u32 %v646, 7
        %v648 = vsub.s32 0, %v647
        %v649 = vrot.slane %v644, %v648
        %v655 = vunpack.c.l.b16 %v640
        %v656 = vunpack.c.l.b16 %v641
        %v657 = vunpack.c.l.b16 %v642
        %v658 = vunpack.c.l.b16 %v643
        %v659 = vpack.c.b16 %v656, %v655
        %v660 = vpack.c.b16 %v658, %v657
        %vm663 = vcmask 261120
        %v665 = vsel %vm663, %v639, 0
        %667 = vmatprep.subr.bf16.mxu0 0
        %668 = vmatpush1.bf16.msra.mxu0 %v659
        %669 = vmatprep.subr.bf16.mxu0 0
        %670 = vmatpush1.bf16.msra.mxu0 %v660
        %671 = vmatprep.subr.bf16.mxu0 0
        %672 = vmatpush1.bf16.msra.mxu0 0
        %673 = vmatprep.subr.bf16.mxu0 0
        %674 = vmatpush1.bf16.msra.mxu0 0
        %675 = vmatprep.subr.bf16.mxu0 0
        %676 = vmatpush1.bf16.msra.mxu0 0
        %677 = vmatprep.subr.bf16.mxu0 0
        %678 = vmatpush1.bf16.msra.mxu0 0
        %679 = vmatprep.subr.bf16.mxu0 0
        %680 = vmatpush1.bf16.msra.mxu0 0
        %681 = vmatprep.subr.bf16.mxu0 0
        %682 = vmatpush1.bf16.msra.mxu0 0
        %683 = vmatprep.subr.bf16.mxu0 0
        %684 = vmatpush1.bf16.msra.mxu0 0
        %685 = vmatprep.subr.bf16.mxu0 0
        %686 = vmatpush1.bf16.msra.mxu0 0
        %687 = vmatprep.subr.bf16.mxu0 0
        %688 = vmatpush1.bf16.msra.mxu0 0
        %689 = vmatprep.subr.bf16.mxu0 0
        %690 = vmatpush1.bf16.msra.mxu0 0
        %691 = vmatprep.subr.bf16.mxu0 0
        %692 = vmatpush1.bf16.msra.mxu0 0
        %693 = vmatprep.subr.bf16.mxu0 0
        %694 = vmatpush1.bf16.msra.mxu0 0
        %695 = vmatprep.subr.bf16.mxu0 0
        %696 = vmatpush1.bf16.msra.mxu0 0
        %697 = vmatprep.subr.bf16.mxu0 0
        %698 = vmatpush1.bf16.msra.mxu0 0
        %699 = vmatprep.mubr.bf16.mxu0 0
        %700 = vmatmul.mubr.bf16.gmra.mrb[0].mxu0 %v665
        %v701 = vpop.f32.mrb[0].mxu0
        %v702 = vadd.f32 %v649, %v701
        %v703 = vpop.f32.mrb[0].mxu0
        %v704 = vpop.f32.mrb[0].mxu0
        %v705 = vpop.f32.mrb[0].mxu0
        %706 = vdwg.mxu0
        %v707 = vmul.f32 %v702, 0.35355338
        %v708 = vpack.c.bf16 %v707, %v707
        %v709 = vld [vmem:[%s4] sm:$0xf]
        %v710 = vld [vmem:[%s4 + $0x4] sm:$0xf]
        %v711 = vld [vmem:[%s4 + $0x8] sm:$0xf]
        %v712 = vld [vmem:[%s4 + $0xc] sm:$0xf]
        %v713 = vld [vmem:[#allocation6] sm:$0x1]
        %v715 = vlaneseq
        %v716 = vshrl.u32 %v715, 7
        %v717 = vsub.s32 0, %v716
        %v718 = vrot.slane %v713, %v717
        %v724 = vunpack.c.l.b16 %v709
        %v725 = vunpack.c.l.b16 %v710
        %v726 = vunpack.c.l.b16 %v711
        %v727 = vunpack.c.l.b16 %v712
        %v728 = vpack.c.b16 %v725, %v724
        %v729 = vpack.c.b16 %v727, %v726
        %732 = vmatprep.subr.bf16.mxu0 0
        %733 = vmatpush1.bf16.msra.mxu0 %v728
        %734 = vmatprep.subr.bf16.mxu0 0
        %735 = vmatpush1.bf16.msra.mxu0 %v729
        %736 = vmatprep.subr.bf16.mxu0 0
        %737 = vmatpush1.bf16.msra.mxu0 0
        %738 = vmatprep.subr.bf16.mxu0 0
        %739 = vmatpush1.bf16.msra.mxu0 0
        %740 = vmatprep.subr.bf16.mxu0 0
        %741 = vmatpush1.bf16.msra.mxu0 0
        %742 = vmatprep.subr.bf16.mxu0 0
        %743 = vmatpush1.bf16.msra.mxu0 0
        %744 = vmatprep.subr.bf16.mxu0 0
        %745 = vmatpush1.bf16.msra.mxu0 0
        %746 = vmatprep.subr.bf16.mxu0 0
        %747 = vmatpush1.bf16.msra.mxu0 0
        %748 = vmatprep.subr.bf16.mxu0 0
        %749 = vmatpush1.bf16.msra.mxu0 0
        %750 = vmatprep.subr.bf16.mxu0 0
        %751 = vmatpush1.bf16.msra.mxu0 0
        %752 = vmatprep.subr.bf16.mxu0 0
        %753 = vmatpush1.bf16.msra.mxu0 0
        %754 = vmatprep.subr.bf16.mxu0 0
        %755 = vmatpush1.bf16.msra.mxu0 0
        %756 = vmatprep.subr.bf16.mxu0 0
        %757 = vmatpush1.bf16.msra.mxu0 0
        %758 = vmatprep.subr.bf16.mxu0 0
        %759 = vmatpush1.bf16.msra.mxu0 0
        %760 = vmatprep.subr.bf16.mxu0 0
        %761 = vmatpush1.bf16.msra.mxu0 0
        %762 = vmatprep.subr.bf16.mxu0 0
        %763 = vmatpush1.bf16.msra.mxu0 0
        %764 = vmatprep.mubr.bf16.mxu0 0
        %765 = vmatmul.mubr.bf16.gmra.mrb[0].mxu0 %v665
        %v766 = vpop.f32.mrb[0].mxu0
        %v767 = vadd.f32 %v718, %v766
        %v768 = vpop.f32.mrb[0].mxu0
        %v769 = vpop.f32.mrb[0].mxu0
        %v770 = vpop.f32.mrb[0].mxu0
        %771 = vdwg.mxu0
        %v772 = vpack.c.bf16 %v767, %v767
        %v773 = vld [vmem:[%s6] sm:$0xf]
        %v774 = vld [vmem:[%s6 + $0x4] sm:$0xf]
        %v775 = vld [vmem:[%s6 + $0x8] sm:$0xf]
        %v776 = vld [vmem:[%s6 + $0xc] sm:$0xf]
        %v777 = vld [vmem:[#allocation8] sm:$0x1]
        %v779 = vlaneseq
        %v780 = vshrl.u32 %v779, 7
        %v781 = vsub.s32 0, %v780
        %v782 = vrot.slane %v777, %v781
        %v788 = vunpack.c.l.b16 %v773
        %v789 = vunpack.c.l.b16 %v774
        %v790 = vunpack.c.l.b16 %v775
        %v791 = vunpack.c.l.b16 %v776
        %v792 = vpack.c.b16 %v789, %v788
        %v793 = vpack.c.b16 %v791, %v790
        %796 = vmatprep.subr.bf16.mxu0 0
        %797 = vmatpush1.bf16.msra.mxu0 %v792
        %798 = vmatprep.subr.bf16.mxu0 0
        %799 = vmatpush1.bf16.msra.mxu0 %v793
        %800 = vmatprep.subr.bf16.mxu0 0
        %801 = vmatpush1.bf16.msra.mxu0 0
        %802 = vmatprep.subr.bf16.mxu0 0
        %803 = vmatpush1.bf16.msra.mxu0 0
        %804 = vmatprep.subr.bf16.mxu0 0
        %805 = vmatpush1.bf16.msra.mxu0 0
        %806 = vmatprep.subr.bf16.mxu0 0
        %807 = vmatpush1.bf16.msra.mxu0 0
        %808 = vmatprep.subr.bf16.mxu0 0
        %809 = vmatpush1.bf16.msra.mxu0 0
        %810 = vmatprep.subr.bf16.mxu0 0
        %811 = vmatpush1.bf16.msra.mxu0 0
        %812 = vmatprep.subr.bf16.mxu0 0
        %813 = vmatpush1.bf16.msra.mxu0 0
        %814 = vmatprep.subr.bf16.mxu0 0
        %815 = vmatpush1.bf16.msra.mxu0 0
        %816 = vmatprep.subr.bf16.mxu0 0
        %817 = vmatpush1.bf16.msra.mxu0 0
        %818 = vmatprep.subr.bf16.mxu0 0
        %819 = vmatpush1.bf16.msra.mxu0 0
        %820 = vmatprep.subr.bf16.mxu0 0
        %821 = vmatpush1.bf16.msra.mxu0 0
        %822 = vmatprep.subr.bf16.mxu0 0
        %823 = vmatpush1.bf16.msra.mxu0 0
        %824 = vmatprep.subr.bf16.mxu0 0
        %825 = vmatpush1.bf16.msra.mxu0 0
        %826 = vmatprep.subr.bf16.mxu0 0
        %827 = vmatpush1.bf16.msra.mxu0 0
        %828 = vmatprep.mubr.bf16.mxu0 0
        %829 = vmatmul.mubr.bf16.gmra.mrb[0].mxu0 %v665
        %v830 = vpop.f32.mrb[0].mxu0
        %v831 = vadd.f32 %v782, %v830
        %v832 = vpop.f32.mrb[0].mxu0
        %v833 = vpop.f32.mrb[0].mxu0
        %v834 = vpop.f32.mrb[0].mxu0
        %835 = vdwg.mxu0
        %v836 = vpack.c.bf16 %v831, %v831
        %838 = vrot.lane.b32.xlu0 %v708, 120
        %v839 = vpop.permute.xlu0 %838
        %840 = vrot.lane.b32.xlu0 %v708, 112
        %v841 = vpop.permute.xlu0 %840
        %842 = vrot.lane.b32.xlu0 %v708, 104
        %v843 = vpop.permute.xlu0 %842
        %845 = vrot.lane.b32.xlu0 %v772, 120
        %v846 = vpop.permute.xlu0 %845
        %847 = vrot.lane.b32.xlu0 %v772, 112
        %v848 = vpop.permute.xlu0 %847
        %849 = vrot.lane.b32.xlu0 %v772, 104
        %v850 = vpop.permute.xlu0 %849
        %852 = vrot.lane.b32.xlu0 %v836, 120
        %v853 = vpop.permute.xlu0 %852
        %854 = vrot.lane.b32.xlu0 %v836, 112
        %v855 = vpop.permute.xlu0 %854
        %856 = vrot.lane.b32.xlu0 %v836, 104
        %v857 = vpop.permute.xlu0 %856
        %v859 = vlaneseq
        %v860 = vshrl.u32 %v859, 7
        %v861 = vsub.s32 0, %v860
        %v862 = vrot.slane %v638, %v861
        %vm864 = vcmask 64512
        %v866 = vsel %vm864, %v708, 0
        %v869 = vsel %vm864, %v772, 0
        %871 = vmatprep.subr.bf16.mxu0 0
        %872 = vmatpush1.bf16.xpose.msra.mxu0 %v869
        %873 = vmatprep.subr.bf16.mxu0 0
        %874 = vmatpush1.bf16.xpose.msra.mxu0 0
        %875 = vmatprep.subr.bf16.mxu0 0
        %876 = vmatpush1.bf16.xpose.msra.mxu0 0
        %877 = vmatprep.subr.bf16.mxu0 0
        %878 = vmatpush1.bf16.xpose.msra.mxu0 0
        %879 = vmatprep.subr.bf16.mxu0 0
        %880 = vmatpush1.bf16.xpose.msra.mxu0 0
        %881 = vmatprep.subr.bf16.mxu0 0
        %882 = vmatpush1.bf16.xpose.msra.mxu0 0
        %883 = vmatprep.subr.bf16.mxu0 0
        %884 = vmatpush1.bf16.xpose.msra.mxu0 0
        %885 = vmatprep.subr.bf16.mxu0 0
        %886 = vmatpush1.bf16.xpose.msra.mxu0 0
        %887 = vmatprep.subr.bf16.mxu0 0
        %888 = vmatpush1.bf16.xpose.msra.mxu0 0
        %889 = vmatprep.subr.bf16.mxu0 0
        %890 = vmatpush1.bf16.xpose.msra.mxu0 0
        %891 = vmatprep.subr.bf16.mxu0 0
        %892 = vmatpush1.bf16.xpose.msra.mxu0 0
        %893 = vmatprep.subr.bf16.mxu0 0
        %894 = vmatpush1.bf16.xpose.msra.mxu0 0
        %895 = vmatprep.subr.bf16.mxu0 0
        %896 = vmatpush1.bf16.xpose.msra.mxu0 0
        %897 = vmatprep.subr.bf16.mxu0 0
        %898 = vmatpush1.bf16.xpose.msra.mxu0 0
        %899 = vmatprep.subr.bf16.mxu0 0
        %900 = vmatpush1.bf16.xpose.msra.mxu0 0
        %901 = vmatprep.subr.bf16.mxu0 0
        %902 = vmatpush1.bf16.xpose.msra.mxu0 0
        %903 = vmatprep.mubr.bf16.mxu0 0
        %904 = vmatmul.mubr.bf16.gmra.mrb[0].mxu0 %v866
        %v905 = vpop.f32.mrb[0].mxu0
        %v906 = vadd.f32 %v862, %v905
        %v907 = vpop.f32.mrb[0].mxu0
        %v908 = vpop.f32.mrb[0].mxu0
        %v909 = vpop.f32.mrb[0].mxu0
        %910 = vdwg.mxu0
        %v912 = vsel %vm864, %v839, 0
        %v915 = vsel %vm864, %v846, 0
        %917 = vmatprep.subr.bf16.mxu0 0
        %918 = vmatpush1.bf16.xpose.msra.mxu0 %v915
        %919 = vmatprep.subr.bf16.mxu0 0
        %920 = vmatpush1.bf16.xpose.msra.mxu0 0
        %921 = vmatprep.subr.bf16.mxu0 0
        %922 = vmatpush1.bf16.xpose.msra.mxu0 0
        %923 = vmatprep.subr.bf16.mxu0 0
        %924 = vmatpush1.bf16.xpose.msra.mxu0 0
        %925 = vmatprep.subr.bf16.mxu0 0
        %926 = vmatpush1.bf16.xpose.msra.mxu0 0
        %927 = vmatprep.subr.bf16.mxu0 0
        %928 = vmatpush1.bf16.xpose.msra.mxu0 0
        %929 = vmatprep.subr.bf16.mxu0 0
        %930 = vmatpush1.bf16.xpose.msra.mxu0 0
        %931 = vmatprep.subr.bf16.mxu0 0
        %932 = vmatpush1.bf16.xpose.msra.mxu0 0
        %933 = vmatprep.subr.bf16.mxu0 0
        %934 = vmatpush1.bf16.xpose.msra.mxu0 0
        %935 = vmatprep.subr.bf16.mxu0 0
        %936 = vmatpush1.bf16.xpose.msra.mxu0 0
        %937 = vmatprep.subr.bf16.mxu0 0
        %938 = vmatpush1.bf16.xpose.msra.mxu0 0
        %939 = vmatprep.subr.bf16.mxu0 0
        %940 = vmatpush1.bf16.xpose.msra.mxu0 0
        %941 = vmatprep.subr.bf16.mxu0 0
        %942 = vmatpush1.bf16.xpose.msra.mxu0 0
        %943 = vmatprep.subr.bf16.mxu0 0
        %944 = vmatpush1.bf16.xpose.msra.mxu0 0
        %945 = vmatprep.subr.bf16.mxu0 0
        %946 = vmatpush1.bf16.xpose.msra.mxu0 0
        %947 = vmatprep.subr.bf16.mxu0 0
        %948 = vmatpush1.bf16.xpose.msra.mxu0 0
        %949 = vmatprep.mubr.bf16.mxu0 0
        %950 = vmatmul.mubr.bf16.gmra.mrb[0].mxu0 %v912
        %v951 = vpop.f32.mrb[0].mxu0
        %v952 = vadd.f32 %v862, %v951
        %v953 = vpop.f32.mrb[0].mxu0
        %v954 = vpop.f32.mrb[0].mxu0
        %v955 = vpop.f32.mrb[0].mxu0
        %956 = vdwg.mxu0
        %v958 = vsel %vm864, %v841, 0
        %v961 = vsel %vm864, %v848, 0
        %963 = vmatprep.subr.bf16.mxu0 0
        %964 = vmatpush1.bf16.xpose.msra.mxu0 %v961
        %965 = vmatprep.subr.bf16.mxu0 0
        %966 = vmatpush1.bf16.xpose.msra.mxu0 0
        %967 = vmatprep.subr.bf16.mxu0 0
        %968 = vmatpush1.bf16.xpose.msra.mxu0 0
        %969 = vmatprep.subr.bf16.mxu0 0
        %970 = vmatpush1.bf16.xpose.msra.mxu0 0
        %971 = vmatprep.subr.bf16.mxu0 0
        %972 = vmatpush1.bf16.xpose.msra.mxu0 0
        %973 = vmatprep.subr.bf16.mxu0 0
        %974 = vmatpush1.bf16.xpose.msra.mxu0 0
        %975 = vmatprep.subr.bf16.mxu0 0
        %976 = vmatpush1.bf16.xpose.msra.mxu0 0
        %977 = vmatprep.subr.bf16.mxu0 0
        %978 = vmatpush1.bf16.xpose.msra.mxu0 0
        %979 = vmatprep.subr.bf16.mxu0 0
        %980 = vmatpush1.bf16.xpose.msra.mxu0 0
        %981 = vmatprep.subr.bf16.mxu0 0
        %982 = vmatpush1.bf16.xpose.msra.mxu0 0
        %983 = vmatprep.subr.bf16.mxu0 0
        %984 = vmatpush1.bf16.xpose.msra.mxu0 0
        %985 = vmatprep.subr.bf16.mxu0 0
        %986 = vmatpush1.bf16.xpose.msra.mxu0 0
        %987 = vmatprep.subr.bf16.mxu0 0
        %988 = vmatpush1.bf16.xpose.msra.mxu0 0
        %989 = vmatprep.subr.bf16.mxu0 0
        %990 = vmatpush1.bf16.xpose.msra.mxu0 0
        %991 = vmatprep.subr.bf16.mxu0 0
        %992 = vmatpush1.bf16.xpose.msra.mxu0 0
        %993 = vmatprep.subr.bf16.mxu0 0
        %994 = vmatpush1.bf16.xpose.msra.mxu0 0
        %995 = vmatprep.mubr.bf16.mxu0 0
        %996 = vmatmul.mubr.bf16.gmra.mrb[0].mxu0 %v958
        %v997 = vpop.f32.mrb[0].mxu0
        %v998 = vadd.f32 %v862, %v997
        %v999 = vpop.f32.mrb[0].mxu0
        %v1000 = vpop.f32.mrb[0].mxu0
        %v1001 = vpop.f32.mrb[0].mxu0
        %1002 = vdwg.mxu0
        %v1004 = vsel %vm864, %v843, 0
        %v1007 = vsel %vm864, %v850, 0
        %1009 = vmatprep.subr.bf16.mxu0 0
        %1010 = vmatpush1.bf16.xpose.msra.mxu0 %v1007
        %1011 = vmatprep.subr.bf16.mxu0 0
        %1012 = vmatpush1.bf16.xpose.msra.mxu0 0
        %1013 = vmatprep.subr.bf16.mxu0 0
        %1014 = vmatpush1.bf16.xpose.msra.mxu0 0
        %1015 = vmatprep.subr.bf16.mxu0 0
        %1016 = vmatpush1.bf16.xpose.msra.mxu0 0
        %1017 = vmatprep.subr.bf16.mxu0 0
        %1018 = vmatpush1.bf16.xpose.msra.mxu0 0
        %1019 = vmatprep.subr.bf16.mxu0 0
        %1020 = vmatpush1.bf16.xpose.msra.mxu0 0
        %1021 = vmatprep.subr.bf16.mxu0 0
        %1022 = vmatpush1.bf16.xpose.msra.mxu0 0
        %1023 = vmatprep.subr.bf16.mxu0 0
        %1024 = vmatpush1.bf16.xpose.msra.mxu0 0
        %1025 = vmatprep.subr.bf16.mxu0 0
        %1026 = vmatpush1.bf16.xpose.msra.mxu0 0
        %1027 = vmatprep.subr.bf16.mxu0 0
        %1028 = vmatpush1.bf16.xpose.msra.mxu0 0
        %1029 = vmatprep.subr.bf16.mxu0 0
        %1030 = vmatpush1.bf16.xpose.msra.mxu0 0
        %1031 = vmatprep.subr.bf16.mxu0 0
        %1032 = vmatpush1.bf16.xpose.msra.mxu0 0
        %1033 = vmatprep.subr.bf16.mxu0 0
        %1034 = vmatpush1.bf16.xpose.msra.mxu0 0
        %1035 = vmatprep.subr.bf16.mxu0 0
        %1036 = vmatpush1.bf16.xpose.msra.mxu0 0
        %1037 = vmatprep.subr.bf16.mxu0 0
        %1038 = vmatpush1.bf16.xpose.msra.mxu0 0
        %1039 = vmatprep.subr.bf16.mxu0 0
        %1040 = vmatpush1.bf16.xpose.msra.mxu0 0
        %1041 = vmatprep.mubr.bf16.mxu0 0
        %1042 = vmatmul.mubr.bf16.gmra.mrb[0].mxu0 %v1004
        %v1043 = vpop.f32.mrb[0].mxu0
        %v1044 = vadd.f32 %v862, %v1043
        %v1045 = vpop.f32.mrb[0].mxu0
        %v1046 = vpop.f32.mrb[0].mxu0
        %v1047 = vpop.f32.mrb[0].mxu0
        %1048 = vdwg.mxu0
        %v1049 = vsel %vm864, %v906, -inf
        %1050 = vmax.xlane.f32.xlu0 %v1049
        %v1051 = vpop.xlane.xlu0 %1050
        %v1052 = vsel %vm864, %v952, -inf
        %1053 = vmax.xlane.f32.xlu0 %v1052
        %v1054 = vpop.xlane.xlu0 %1053
        %v1055 = vsel %vm864, %v998, -inf
        %1056 = vmax.xlane.f32.xlu0 %v1055
        %v1057 = vpop.xlane.xlu0 %1056
        %v1058 = vsel %vm864, %v1044, -inf
        %1059 = vmax.xlane.f32.xlu0 %v1058
        %v1060 = vpop.xlane.xlu0 %1059
        %v1061 = vsub.f32 %v906, %v1051
        %v1062 = vsub.f32 %v952, %v1054
        %v1063 = vsub.f32 %v998, %v1057
        %v1064 = vsub.f32 %v1044, %v1060
        %v1065 = vmul.f32 %v1061, 1.442695
        %v1066 = vpow.pop %v1065
        %v1067 = vmul.f32 %v1062, 1.442695
        %v1068 = vpow.pop %v1067
        %v1069 = vmul.f32 %v1063, 1.442695
        %v1070 = vpow.pop %v1069
        %v1071 = vmul.f32 %v1064, 1.442695
        %v1072 = vpow.pop %v1071
        %v1073 = vsel %vm864, %v1066, 0.0
        %1074 = vadd.xlane.f32.xlu0 %v1073
        %v1075 = vpop.xlane.xlu0 %1074
        %v1076 = vsel %vm864, %v1068, 0.0
        %1077 = vadd.xlane.f32.xlu0 %v1076
        %v1078 = vpop.xlane.xlu0 %1077
        %v1079 = vsel %vm864, %v1070, 0.0
        %1080 = vadd.xlane.f32.xlu0 %v1079
        %v1081 = vpop.xlane.xlu0 %1080
        %v1082 = vsel %vm864, %v1072, 0.0
        %1083 = vadd.xlane.f32.xlu0 %v1082
        %v1084 = vpop.xlane.xlu0 %1083
        %v1085 = vrcp.pop %v1075
        %v1086 = vrcp.pop %v1078
        %v1087 = vrcp.pop %v1081
        %v1088 = vrcp.pop %v1084
        %v1089 = vmul.f32 %v1066, %v1085
        %v1090 = vmul.f32 %v1068, %v1086
        %v1091 = vmul.f32 %v1070, %v1087
        %v1092 = vmul.f32 %v1072, %v1088
        %v1093 = vpack.c.bf16 %v1089, %v1089
        %v1094 = vpack.c.bf16 %v1090, %v1090
        %v1095 = vpack.c.bf16 %v1091, %v1091
        %v1096 = vpack.c.bf16 %v1092, %v1092
        %v1098 = vsel %vm864, %v1093, 0
        %vm1100 = vcmask 1043456
        %v1102 = vsel %vm1100, %v836, 0
        %1104 = vmatprep.subr.bf16.mxu0 0
        %1105 = vmatpush1.bf16.msra.mxu0 %v1102
        %1106 = vmatprep.subr.bf16.mxu0 0
        %1107 = vmatpush1.bf16.msra.mxu0 0
        %1108 = vmatprep.subr.bf16.mxu0 0
        %1109 = vmatpush1.bf16.msra.mxu0 0
        %1110 = vmatprep.subr.bf16.mxu0 0
        %1111 = vmatpush1.bf16.msra.mxu0 0
        %1112 = vmatprep.subr.bf16.mxu0 0
        %1113 = vmatpush1.bf16.msra.mxu0 0
        %1114 = vmatprep.subr.bf16.mxu0 0
        %1115 = vmatpush1.bf16.msra.mxu0 0
        %1116 = vmatprep.subr.bf16.mxu0 0
        %1117 = vmatpush1.bf16.msra.mxu0 0
        %1118 = vmatprep.subr.bf16.mxu0 0
        %1119 = vmatpush1.bf16.msra.mxu0 0
        %1120 = vmatprep.subr.bf16.mxu0 0
        %1121 = vmatpush1.bf16.msra.mxu0 0
        %1122 = vmatprep.subr.bf16.mxu0 0
        %1123 = vmatpush1.bf16.msra.mxu0 0
        %1124 = vmatprep.subr.bf16.mxu0 0
        %1125 = vmatpush1.bf16.msra.mxu0 0
        %1126 = vmatprep.subr.bf16.mxu0 0
        %1127 = vmatpush1.bf16.msra.mxu0 0
        %1128 = vmatprep.subr.bf16.mxu0 0
        %1129 = vmatpush1.bf16.msra.mxu0 0
        %1130 = vmatprep.subr.bf16.mxu0 0
        %1131 = vmatpush1.bf16.msra.mxu0 0
        %1132 = vmatprep.subr.bf16.mxu0 0
        %1133 = vmatpush1.bf16.msra.mxu0 0
        %1134 = vmatprep.subr.bf16.mxu0 0
        %1135 = vmatpush1.bf16.msra.mxu0 0
        %1136 = vmatprep.mubr.bf16.mxu0 0
        %1137 = vmatmul.mubr.bf16.gmra.mrb[0].mxu0 %v1098
        %v1138 = vpop.f32.mrb[0].mxu0
        %v1139 = vadd.f32 0.0, %v1138
        %v1140 = vpop.f32.mrb[0].mxu0
        %v1141 = vpop.f32.mrb[0].mxu0
        %v1142 = vpop.f32.mrb[0].mxu0
        %1143 = vdwg.mxu0
        %v1145 = vsel %vm864, %v1094, 0
        %v1148 = vsel %vm1100, %v853, 0
        %1150 = vmatprep.subr.bf16.mxu0 0
        %1151 = vmatpush1.bf16.msra.mxu0 %v1148
        %1152 = vmatprep.subr.bf16.mxu0 0
        %1153 = vmatpush1.bf16.msra.mxu0 0
        %1154 = vmatprep.subr.bf16.mxu0 0
        %1155 = vmatpush1.bf16.msra.mxu0 0
        %1156 = vmatprep.subr.bf16.mxu0 0
        %1157 = vmatpush1.bf16.msra.mxu0 0
        %1158 = vmatprep.subr.bf16.mxu0 0
        %1159 = vmatpush1.bf16.msra.mxu0 0
        %1160 = vmatprep.subr.bf16.mxu0 0
        %1161 = vmatpush1.bf16.msra.mxu0 0
        %1162 = vmatprep.subr.bf16.mxu0 0
        %1163 = vmatpush1.bf16.msra.mxu0 0
        %1164 = vmatprep.subr.bf16.mxu0 0
        %1165 = vmatpush1.bf16.msra.mxu0 0
        %1166 = vmatprep.subr.bf16.mxu0 0
        %1167 = vmatpush1.bf16.msra.mxu0 0
        %1168 = vmatprep.subr.bf16.mxu0 0
        %1169 = vmatpush1.bf16.msra.mxu0 0
        %1170 = vmatprep.subr.bf16.mxu0 0
        %1171 = vmatpush1.bf16.msra.mxu0 0
        %1172 = vmatprep.subr.bf16.mxu0 0
        %1173 = vmatpush1.bf16.msra.mxu0 0
        %1174 = vmatprep.subr.bf16.mxu0 0
        %1175 = vmatpush1.bf16.msra.mxu0 0
        %1176 = vmatprep.subr.bf16.mxu0 0
        %1177 = vmatpush1.bf16.msra.mxu0 0
        %1178 = vmatprep.subr.bf16.mxu0 0
        %1179 = vmatpush1.bf16.msra.mxu0 0
        %1180 = vmatprep.subr.bf16.mxu0 0
        %1181 = vmatpush1.bf16.msra.mxu0 0
        %1182 = vmatprep.mubr.bf16.mxu0 0
        %1183 = vmatmul.mubr.bf16.gmra.mrb[0].mxu0 %v1145
        %v1184 = vpop.f32.mrb[0].mxu0
        %v1185 = vadd.f32 0.0, %v1184
        %v1186 = vpop.f32.mrb[0].mxu0
        %v1187 = vpop.f32.mrb[0].mxu0
        %v1188 = vpop.f32.mrb[0].mxu0
        %1189 = vdwg.mxu0
        %v1191 = vsel %vm864, %v1095, 0
        %v1194 = vsel %vm1100, %v855, 0
        %1196 = vmatprep.subr.bf16.mxu0 0
        %1197 = vmatpush1.bf16.msra.mxu0 %v1194
        %1198 = vmatprep.subr.bf16.mxu0 0
        %1199 = vmatpush1.bf16.msra.mxu0 0
        %1200 = vmatprep.subr.bf16.mxu0 0
        %1201 = vmatpush1.bf16.msra.mxu0 0
        %1202 = vmatprep.subr.bf16.mxu0 0
        %1203 = vmatpush1.bf16.msra.mxu0 0
        %1204 = vmatprep.subr.bf16.mxu0 0
        %1205 = vmatpush1.bf16.msra.mxu0 0
        %1206 = vmatprep.subr.bf16.mxu0 0
        %1207 = vmatpush1.bf16.msra.mxu0 0
        %1208 = vmatprep.subr.bf16.mxu0 0
        %1209 = vmatpush1.bf16.msra.mxu0 0
        %1210 = vmatprep.subr.bf16.mxu0 0
        %1211 = vmatpush1.bf16.msra.mxu0 0
        %1212 = vmatprep.subr.bf16.mxu0 0
        %1213 = vmatpush1.bf16.msra.mxu0 0
        %1214 = vmatprep.subr.bf16.mxu0 0
        %1215 = vmatpush1.bf16.msra.mxu0 0
        %1216 = vmatprep.subr.bf16.mxu0 0
        %1217 = vmatpush1.bf16.msra.mxu0 0
        %1218 = vmatprep.subr.bf16.mxu0 0
        %1219 = vmatpush1.bf16.msra.mxu0 0
        %1220 = vmatprep.subr.bf16.mxu0 0
        %1221 = vmatpush1.bf16.msra.mxu0 0
        %1222 = vmatprep.subr.bf16.mxu0 0
        %1223 = vmatpush1.bf16.msra.mxu0 0
        %1224 = vmatprep.subr.bf16.mxu0 0
        %1225 = vmatpush1.bf16.msra.mxu0 0
        %1226 = vmatprep.subr.bf16.mxu0 0
        %1227 = vmatpush1.bf16.msra.mxu0 0
        %1228 = vmatprep.mubr.bf16.mxu0 0
        %1229 = vmatmul.mubr.bf16.gmra.mrb[0].mxu0 %v1191
        %v1230 = vpop.f32.mrb[0].mxu0
        %v1231 = vadd.f32 0.0, %v1230
        %v1232 = vpop.f32.mrb[0].mxu0
        %v1233 = vpop.f32.mrb[0].mxu0
        %v1234 = vpop.f32.mrb[0].mxu0
        %1235 = vdwg.mxu0
        %v1237 = vsel %vm864, %v1096, 0
        %v1240 = vsel %vm1100, %v857, 0
        %1242 = vmatprep.subr.bf16.mxu0 0
        %1243 = vmatpush1.bf16.msra.mxu0 %v1240
        %1244 = vmatprep.subr.bf16.mxu0 0
        %1245 = vmatpush1.bf16.msra.mxu0 0
        %1246 = vmatprep.subr.bf16.mxu0 0
        %1247 = vmatpush1.bf16.msra.mxu0 0
        %1248 = vmatprep.subr.bf16.mxu0 0
        %1249 = vmatpush1.bf16.msra.mxu0 0
        %1250 = vmatprep.subr.bf16.mxu0 0
        %1251 = vmatpush1.bf16.msra.mxu0 0
        %1252 = vmatprep.subr.bf16.mxu0 0
        %1253 = vmatpush1.bf16.msra.mxu0 0
        %1254 = vmatprep.subr.bf16.mxu0 0
        %1255 = vmatpush1.bf16.msra.mxu0 0
        %1256 = vmatprep.subr.bf16.mxu0 0
        %1257 = vmatpush1.bf16.msra.mxu0 0
        %1258 = vmatprep.subr.bf16.mxu0 0
        %1259 = vmatpush1.bf16.msra.mxu0 0
        %1260 = vmatprep.subr.bf16.mxu0 0
        %1261 = vmatpush1.bf16.msra.mxu0 0
        %1262 = vmatprep.subr.bf16.mxu0 0
        %1263 = vmatpush1.bf16.msra.mxu0 0
        %1264 = vmatprep.subr.bf16.mxu0 0
        %1265 = vmatpush1.bf16.msra.mxu0 0
        %1266 = vmatprep.subr.bf16.mxu0 0
        %1267 = vmatpush1.bf16.msra.mxu0 0
        %1268 = vmatprep.subr.bf16.mxu0 0
        %1269 = vmatpush1.bf16.msra.mxu0 0
        %1270 = vmatprep.subr.bf16.mxu0 0
        %1271 = vmatpush1.bf16.msra.mxu0 0
        %1272 = vmatprep.subr.bf16.mxu0 0
        %1273 = vmatpush1.bf16.msra.mxu0 0
        %1274 = vmatprep.mubr.bf16.mxu0 0
        %1275 = vmatmul.mubr.bf16.gmra.mrb[0].mxu0 %v1237
        %v1276 = vpop.f32.mrb[0].mxu0
        %v1277 = vadd.f32 0.0, %v1276
        %v1278 = vpop.f32.mrb[0].mxu0
        %v1279 = vpop.f32.mrb[0].mxu0
        %v1280 = vpop.f32.mrb[0].mxu0
        %1281 = vdwg.mxu0
        %v1282 = vpack.c.bf16 %v1139, %v1139
        %vm1283 = vcmask 60416
        %1284 = vst.msk [vmem:[#allocation2] sm:$0xf] %vm1283, %v1282
        %v1285 = vpack.c.bf16 %v1185, %v1185
        %v1287 = vunpack.c.l.b16 %v1285
        %v1288 = vpack.c.b16 %v1287, %v1287
        %1289 = vrot.lane.b32.xlu0 %v1288, 8
        %v1290 = vpop.permute.xlu0 %1289
        %vm1292 = vcmask 126016
        %1293 = vst.msk [vmem:[#allocation2] sm:$0xf] %vm1292, %v1290
        %v1294 = vpack.c.bf16 %v1231, %v1231
        %v1296 = vunpack.c.l.b16 %v1294
        %v1297 = vpack.c.b16 %v1296, %v1296
        %1298 = vrot.lane.b32.xlu0 %v1297, 16
        %v1299 = vpop.permute.xlu0 %1298
        %vm1301 = vcmask 191616
        %1302 = vst.msk [vmem:[#allocation2] sm:$0xf] %vm1301, %v1299
        %v1303 = vpack.c.bf16 %v1277, %v1277
        %v1305 = vunpack.c.l.b16 %v1303
        %v1306 = vpack.c.b16 %v1305, %v1305
        %1307 = vrot.lane.b32.xlu0 %v1306, 24
        %v1308 = vpop.permute.xlu0 %1307
        %vm1310 = vcmask 257216
        %1311 = vst.msk [vmem:[#allocation2] sm:$0xf] %vm1310, %v1308
        %v1312 = vld [vmem:[#allocation2] sm:$0xf]
        %v1313 = vld [vmem:[%s8] sm:$0xf]
        %v1314 = vld [vmem:[%s8 + $0x4] sm:$0xf]
        %v1315 = vld [vmem:[%s8 + $0x8] sm:$0xf]
        %v1316 = vld [vmem:[%s8 + $0xc] sm:$0xf]
        %v1317 = vld [vmem:[#allocation9] sm:$0x1]
        %v1319 = vlaneseq
        %v1320 = vshrl.u32 %v1319, 7
        %v1321 = vsub.s32 0, %v1320
        %v1322 = vrot.slane %v1317, %v1321
        %v1328 = vunpack.c.l.b16 %v1313
        %v1329 = vunpack.c.l.b16 %v1314
        %v1330 = vunpack.c.l.b16 %v1315
        %v1331 = vunpack.c.l.b16 %v1316
        %v1332 = vpack.c.b16 %v1329, %v1328
        %v1333 = vpack.c.b16 %v1331, %v1330
        %v1337 = vsel %vm663, %v1312, 0
        %1339 = vmatprep.subr.bf16.mxu0 0
        %1340 = vmatpush1.bf16.msra.mxu0 %v1332
        %1341 = vmatprep.subr.bf16.mxu0 0
        %1342 = vmatpush1.bf16.msra.mxu0 %v1333
        %1343 = vmatprep.subr.bf16.mxu0 0
        %1344 = vmatpush1.bf16.msra.mxu0 0
        %1345 = vmatprep.subr.bf16.mxu0 0
        %1346 = vmatpush1.bf16.msra.mxu0 0
        %1347 = vmatprep.subr.bf16.mxu0 0
        %1348 = vmatpush1.bf16.msra.mxu0 0
        %1349 = vmatprep.subr.bf16.mxu0 0
        %1350 = vmatpush1.bf16.msra.mxu0 0
        %1351 = vmatprep.subr.bf16.mxu0 0
        %1352 = vmatpush1.bf16.msra.mxu0 0
        %1353 = vmatprep.subr.bf16.mxu0 0
        %1354 = vmatpush1.bf16.msra.mxu0 0
        %1355 = vmatprep.subr.bf16.mxu0 0
        %1356 = vmatpush1.bf16.msra.mxu0 0
        %1357 = vmatprep.subr.bf16.mxu0 0
        %1358 = vmatpush1.bf16.msra.mxu0 0
        %1359 = vmatprep.subr.bf16.mxu0 0
        %1360 = vmatpush1.bf16.msra.mxu0 0
        %1361 = vmatprep.subr.bf16.mxu0 0
        %1362 = vmatpush1.bf16.msra.mxu0 0
        %1363 = vmatprep.subr.bf16.mxu0 0
        %1364 = vmatpush1.bf16.msra.mxu0 0
        %1365 = vmatprep.subr.bf16.mxu0 0
        %1366 = vmatpush1.bf16.msra.mxu0 0
        %1367 = vmatprep.subr.bf16.mxu0 0
        %1368 = vmatpush1.bf16.msra.mxu0 0
        %1369 = vmatprep.subr.bf16.mxu0 0
        %1370 = vmatpush1.bf16.msra.mxu0 0
        %1371 = vmatprep.mubr.bf16.mxu0 0
        %1372 = vmatmul.mubr.bf16.gmra.mrb[0].mxu0 %v1337
        %v1373 = vpop.f32.mrb[0].mxu0
        %v1374 = vadd.f32 %v1322, %v1373
        %v1375 = vpop.f32.mrb[0].mxu0
        %v1376 = vpop.f32.mrb[0].mxu0
        %v1377 = vpop.f32.mrb[0].mxu0
        %1378 = vdwg.mxu0
        %v1379 = vadd.f32 %v1374, %v637
        %v1380 = vsel %vm663, %v1379, 0.0
        %1381 = vadd.xlane.f32.xlu0 %v1380
        %v1382 = vpop.xlane.xlu0 %1381
        %v1383 = vrcp.pop 32.0
        %v1384 = vmul.f32 %v1382, %v1383
        %v1385 = vsub.f32 %v1379, %v1384
        %v1386 = vmul.f32 %v1385, %v1385
        %v1387 = vsel %vm663, %v1386, 0.0
        %1388 = vadd.xlane.f32.xlu0 %v1387
        %v1389 = vpop.xlane.xlu0 %1388
        %v1390 = vmul.f32 %v1389, %v1383
        %v1391 = vadd.f32 %v1390, 1e-12
        %v1392 = vrsqrt.pop %v1391
        %v1393 = vmul.f32 %v1385, %v1392
        %v1394 = vld [vmem:[%s10] sm:$0x1]
        %v1396 = vlaneseq
        %v1397 = vshrl.u32 %v1396, 7
        %v1398 = vsub.s32 0, %v1397
        %v1399 = vrot.slane %v1394, %v1398
        %v1401 = vmul.f32 %v1393, %v1399
        %v1402 = vld [vmem:[%s11] sm:$0x1]
        %v1404 = vlaneseq
        %v1405 = vshrl.u32 %v1404, 7
        %v1406 = vsub.s32 0, %v1405
        %v1407 = vrot.slane %v1402, %v1406
        %v1409 = vadd.f32 %v1401, %v1407
        %v1410 = vpack.c.bf16 %v1409, %v1409
        %v1411 = vld [vmem:[%s12] sm:$0xf]
        %v1412 = vld [vmem:[%s12 + $0x4] sm:$0xf]
        %v1413 = vld [vmem:[%s12 + $0x8] sm:$0xf]
        %v1414 = vld [vmem:[%s12 + $0xc] sm:$0xf]
        %v1415 = vld [vmem:[%s13] sm:$0x1]
        %v1417 = vlaneseq
        %v1418 = vshrl.u32 %v1417, 7
        %v1419 = vsub.s32 0, %v1418
        %v1420 = vrot.slane %v1415, %v1419
        %v1426 = vunpack.c.l.b16 %v1411
        %v1427 = vunpack.c.l.b16 %v1412
        %v1428 = vunpack.c.l.b16 %v1413
        %v1429 = vunpack.c.l.b16 %v1414
        %v1430 = vpack.c.b16 %v1427, %v1426
        %v1431 = vpack.c.b16 %v1429, %v1428
        %v1435 = vsel %vm663, %v1410, 0
        %1437 = vmatprep.subr.bf16.mxu0 0
        %1438 = vmatpush1.bf16.msra.mxu0 %v1430
        %1439 = vmatprep.subr.bf16.mxu0 0
        %1440 = vmatpush1.bf16.msra.mxu0 %v1431
        %1441 = vmatprep.subr.bf16.mxu0 0
        %1442 = vmatpush1.bf16.msra.mxu0 0
        %1443 = vmatprep.subr.bf16.mxu0 0
        %1444 = vmatpush1.bf16.msra.mxu0 0
        %1445 = vmatprep.subr.bf16.mxu0 0
        %1446 = vmatpush1.bf16.msra.mxu0 0
        %1447 = vmatprep.subr.bf16.mxu0 0
        %1448 = vmatpush1.bf16.msra.mxu0 0
        %1449 = vmatprep.subr.bf16.mxu0 0
        %1450 = vmatpush1.bf16.msra.mxu0 0
        %1451 = vmatprep.subr.bf16.mxu0 0
        %1452 = vmatpush1.bf16.msra.mxu0 0
        %1453 = vmatprep.subr.bf16.mxu0 0
        %1454 = vmatpush1.bf16.msra.mxu0 0
        %1455 = vmatprep.subr.bf16.mxu0 0
        %1456 = vmatpush1.bf16.msra.mxu0 0
        %1457 = vmatprep.subr.bf16.mxu0 0
        %1458 = vmatpush1.bf16.msra.mxu0 0
        %1459 = vmatprep.subr.bf16.mxu0 0
        %1460 = vmatpush1.bf16.msra.mxu0 0
        %1461 = vmatprep.subr.bf16.mxu0 0
        %1462 = vmatpush1.bf16.msra.mxu0 0
        %1463 = vmatprep.subr.bf16.mxu0 0
        %1464 = vmatpush1.bf16.msra.mxu0 0
        %1465 = vmatprep.subr.bf16.mxu0 0
        %1466 = vmatpush1.bf16.msra.mxu0 0
        %1467 = vmatprep.subr.bf16.mxu0 0
        %1468 = vmatpush1.bf16.msra.mxu0 0
        %1469 = vmatprep.mubr.bf16.mxu0 0
        %1470 = vmatmul.mubr.bf16.gmra.mrb[0].mxu0 %v1435
        %v1471 = vpop.f32.mrb[0].mxu0
        %v1472 = vadd.f32 %v1420, %v1471
        %v1473 = vpop.f32.mrb[0].mxu0
        %v1474 = vpop.f32.mrb[0].mxu0
        %v1475 = vpop.f32.mrb[0].mxu0
        %1476 = vdwg.mxu0
        %v1477 = vmul.f32 %v1472, %v1472
        %v1478 = vmul.f32 %v1472, %v1477
        %v1479 = vmul.f32 %v1478, 0.044715
        %v1480 = vadd.f32 %v1472, %v1479
        %v1481 = vmul.f32 %v1480, 0.7978846
        %v1482 = vtanh.pop %v1481
        %v1483 = vadd.f32 %v1482, 1.0
        %v1484 = vmul.f32 %v1483, 0.5
        %v1485 = vmul.f32 %v1472, %v1484
        %v1486 = vpack.c.bf16 %v1485, %v1485
        %v1487 = vld [vmem:[%s14] sm:$0xf]
        %v1488 = vld [vmem:[%s14 + $0x4] sm:$0xf]
        %v1489 = vld [vmem:[%s14 + $0x8] sm:$0xf]
        %v1490 = vld [vmem:[%s14 + $0xc] sm:$0xf]
        %v1491 = vld [vmem:[%s14 + $0x10] sm:$0xf]
        %v1492 = vld [vmem:[%s14 + $0x14] sm:$0xf]
        %v1493 = vld [vmem:[%s14 + $0x18] sm:$0xf]
        %v1494 = vld [vmem:[%s14 + $0x1c] sm:$0xf]
        %v1495 = vld [vmem:[%s14 + $0x20] sm:$0xf]
        %v1496 = vld [vmem:[%s14 + $0x24] sm:$0xf]
        %v1497 = vld [vmem:[%s14 + $0x28] sm:$0xf]
        %v1498 = vld [vmem:[%s14 + $0x2c] sm:$0xf]
        %v1499 = vld [vmem:[%s14 + $0x30] sm:$0xf]
        %v1500 = vld [vmem:[%s14 + $0x34] sm:$0xf]
        %v1501 = vld [vmem:[%s14 + $0x38] sm:$0xf]
        %v1502 = vld [vmem:[%s14 + $0x3c] sm:$0xf]
        %v1503 = vld [vmem:[%s15] sm:$0x1]
        %v1505 = vlaneseq
        %v1506 = vshrl.u32 %v1505, 7
        %v1507 = vsub.s32 0, %v1506
        %v1508 = vrot.slane %v1503, %v1507
        %v1526 = vunpack.c.l.b16 %v1487
        %v1527 = vunpack.c.l.b16 %v1488
        %v1528 = vunpack.c.l.b16 %v1489
        %v1529 = vunpack.c.l.b16 %v1490
        %v1530 = vunpack.c.l.b16 %v1491
        %v1531 = vunpack.c.l.b16 %v1492
        %v1532 = vunpack.c.l.b16 %v1493
        %v1533 = vunpack.c.l.b16 %v1494
        %v1534 = vunpack.c.l.b16 %v1495
        %v1535 = vunpack.c.l.b16 %v1496
        %v1536 = vunpack.c.l.b16 %v1497
        %v1537 = vunpack.c.l.b16 %v1498
        %v1538 = vunpack.c.l.b16 %v1499
        %v1539 = vunpack.c.l.b16 %v1500
        %v1540 = vunpack.c.l.b16 %v1501
        %v1541 = vunpack.c.l.b16 %v1502
        %v1542 = vpack.c.b16 %v1527, %v1526
        %v1543 = vpack.c.b16 %v1529, %v1528
        %v1544 = vpack.c.b16 %v1531, %v1530
        %v1545 = vpack.c.b16 %v1533, %v1532
        %v1546 = vpack.c.b16 %v1535, %v1534
        %v1547 = vpack.c.b16 %v1537, %v1536
        %v1548 = vpack.c.b16 %v1539, %v1538
        %v1549 = vpack.c.b16 %v1541, %v1540
        %1558 = vmatprep.subr.bf16.mxu0 0
        %1559 = vmatpush1.bf16.msra.mxu0 %v1542
        %1560 = vmatprep.subr.bf16.mxu0 0
        %1561 = vmatpush1.bf16.msra.mxu0 %v1543
        %1562 = vmatprep.subr.bf16.mxu0 0
        %1563 = vmatpush1.bf16.msra.mxu0 %v1544
        %1564 = vmatprep.subr.bf16.mxu0 0
        %1565 = vmatpush1.bf16.msra.mxu0 %v1545
        %1566 = vmatprep.subr.bf16.mxu0 0
        %1567 = vmatpush1.bf16.msra.mxu0 %v1546
        %1568 = vmatprep.subr.bf16.mxu0 0
        %1569 = vmatpush1.bf16.msra.mxu0 %v1547
        %1570 = vmatprep.subr.bf16.mxu0 0
        %1571 = vmatpush1.bf16.msra.mxu0 %v1548
        %1572 = vmatprep.subr.bf16.mxu0 0
        %1573 = vmatpush1.bf16.msra.mxu0 %v1549
        %1574 = vmatprep.subr.bf16.mxu0 0
        %1575 = vmatpush1.bf16.msra.mxu0 0
        %1576 = vmatprep.subr.bf16.mxu0 0
        %1577 = vmatpush1.bf16.msra.mxu0 0
        %1578 = vmatprep.subr.bf16.mxu0 0
        %1579 = vmatpush1.bf16.msra.mxu0 0
        %1580 = vmatprep.subr.bf16.mxu0 0
        %1581 = vmatpush1.bf16.msra.mxu0 0
        %1582 = vmatprep.subr.bf16.mxu0 0
        %1583 = vmatpush1.bf16.msra.mxu0 0
        %1584 = vmatprep.subr.bf16.mxu0 0
        %1585 = vmatpush1.bf16.msra.mxu0 0
        %1586 = vmatprep.subr.bf16.mxu0 0
        %1587 = vmatpush1.bf16.msra.mxu0 0
        %1588 = vmatprep.subr.bf16.mxu0 0
        %1589 = vmatpush1.bf16.msra.mxu0 0
        %1590 = vmatprep.mubr.bf16.mxu0 0
        %1591 = vmatmul.mubr.bf16.gmra.mrb[0].mxu0 %v1486
        %v1592 = vpop.f32.mrb[0].mxu0
        %v1593 = vadd.f32 %v1508, %v1592
        %v1594 = vpop.f32.mrb[0].mxu0
        %v1595 = vpop.f32.mrb[0].mxu0
        %v1596 = vpop.f32.mrb[0].mxu0
        %1597 = vdwg.mxu0
        %v1598 = vadd.f32 %v1593, %v1409
        %v1599 = vsel %vm663, %v1598, 0.0
        %1600 = vadd.xlane.f32.xlu0 %v1599
        %v1601 = vpop.xlane.xlu0 %1600
        %v1602 = vmul.f32 %v1601, %v1383
        %v1603 = vsub.f32 %v1598, %v1602
        %v1604 = vmul.f32 %v1603, %v1603
        %v1605 = vsel %vm663, %v1604, 0.0
        %1606 = vadd.xlane.f32.xlu0 %v1605
        %v1607 = vpop.xlane.xlu0 %1606
        %v1608 = vmul.f32 %v1607, %v1383
        %v1609 = vadd.f32 %v1608, 1e-12
        %v1610 = vrsqrt.pop %v1609
        %v1611 = vmul.f32 %v1603, %v1610
        %v1612 = vld [vmem:[%s16] sm:$0x1]
        %v1614 = vlaneseq
        %v1615 = vshrl.u32 %v1614, 7
        %v1616 = vsub.s32 0, %v1615
        %v1617 = vrot.slane %v1612, %v1616
        %v1619 = vmul.f32 %v1611, %v1617
        %v1620 = vld [vmem:[%s17] sm:$0x1]
        %v1622 = vlaneseq
        %v1623 = vshrl.u32 %v1622, 7
        %v1624 = vsub.s32 0, %v1623
        %v1625 = vrot.slane %v1620, %v1624
        %v1627 = vadd.f32 %v1619, %v1625
        %1628 = vst.msk [vmem:[%s628] sm:$0xff] %vm663, %v1627
        %s1629 = sand.u32 %s431, 1
        %s1630 = scalar_lea.sflag [#allocation5], %s1629
        %s1631 = sand.u32 %s431, 1
        %s1632 = smul.addr %s1631, 8
        %s1633 = scalar_lea.vmem [#allocation11], %s1632
        // Predicated region
        $region109: #{tpu_custom_call.1} parent=91 // pred_check
          %p1634 = pneg %p441
        $region110: #{tpu_custom_call.1} parent=91 // pred_check_branch
          %1636 = sbr.rel (%p1634) target = $region112
        $region111: #{tpu_custom_call.1} parent=91 // pred_region
          %s1638 = ssub.s32 128, 128
          %1639 = vsyncadd %s1630, %s1638
          %s1640 = smul.addr %s35, 128
          %s1641 = scalar_lea.hbm %s18, %s1640
          %s1643 = sshll.u32 %s1633, 4
          %s1644 = int_to_ptr.vmem [resolvable:$true] %s1643
          %1646 = dma.vmem_to_hbm [thread:$0]  %s1644, 128, %s1641, %s1630
        $region112: #{tpu_custom_call.1} parent=91 // pred_fallthru
          _
      $region92: #{tpu_custom_call.1} parent=5 // pred_fallthru
        _
      %p1647 = scmp.le.s32.totalorder 2, %s30
      // Predicated region
      $region113: #{tpu_custom_call.1} parent=5 // pred_check
        %p1648 = pneg %p1647
      $region114: #{tpu_custom_call.1} parent=5 // pred_check_branch
        %1650 = sbr.rel (%p1648) target = $region116
      $region115: #{tpu_custom_call.1} parent=5 // pred_region
        %s1651 = ssub.s32 %s30, 2
        // Predicated region
        $region117: #{tpu_custom_call.1} parent=115 // pred_check
          %p1652 = pneg %p447
        $region118: #{tpu_custom_call.1} parent=115 // pred_check_branch
          %1654 = sbr.rel (%p1652) target = $region120
        $region119: #{tpu_custom_call.1} parent=115 // pred_region
          %s1655 = sand.u32 %s432, 1
          %s1656 = scalar_lea.sflag [#allocation5], %s1655
          %s1657 = sand.u32 %s432, 1
          %s1658 = smul.addr %s1657, 8
          %s1659 = scalar_lea.vmem [#allocation11], %s1658
          %1660 = dma.done %s1656, 128
        $region120: #{tpu_custom_call.1} parent=115 // pred_fallthru
          _
      $region116: #{tpu_custom_call.1} parent=5 // pred_fallthru
        _
    $region6: #{tpu_custom_call.1} parent=1 // loop_footer
      %s34 = sadd.s32 1, %s30
    $region7: #{tpu_custom_call.1} parent=1 // loop_footer_branch
      %29 = sbr.rel target = $region3
    $region8: #{tpu_custom_call.1} parent=1 // loop_exit
      _
    %1661 = vsyncpa [#allocation4], 1
    %s1662 = scalar_lea.sflag [#allocation4], 1
    %1663 = vsyncpa %s1662, 1
    %1664 = vsyncpa [#allocation7], 1
    %1665 = vsyncpa [#allocation10], 1
    %1666 = vsyncpa [#allocation5], 1
    %s1667 = scalar_lea.sflag [#allocation5], 1
    %1668 = vsyncpa %s1667, 1

</llo_original>
